<compile_context>
chip_gen: v7x
topology: tpu7x:2x2x1
jax: 0.10.0
libtpu: 0.0.40
codegen_flags: <defaults>
</compile_context>

<pallas_src>
import jax
import jax.image
import jax.numpy as jnp
from jax import lax
from jax.experimental import pallas as pl
from jax.experimental.pallas import tpu as pltpu


def _bilinear_matrix(in_size, out_size):
    """(out_size, in_size) row-stochastic 1-D bilinear interpolation matrix,
    half-pixel centers (PyTorch align_corners=False)."""
    if in_size == out_size:
        return jnp.eye(out_size, dtype=jnp.float32)
    out_idx = jnp.arange(out_size, dtype=jnp.float32)
    src = (out_idx + 0.5) * (in_size / out_size) - 0.5
    src = jnp.clip(src, 0.0, float(in_size - 1))
    lo = jnp.floor(src)
    frac = src - lo
    lo_i = lo.astype(jnp.int32)
    hi_i = jnp.minimum(lo_i + 1, in_size - 1)
    cols = jnp.arange(in_size, dtype=jnp.int32)
    m_lo = (cols[None, :] == lo_i[:, None]).astype(jnp.float32) * (1.0 - frac)[:, None]
    m_hi = (cols[None, :] == hi_i[:, None]).astype(jnp.float32) * frac[:, None]
    return m_lo + m_hi


def _flow_kernel(x_ref, w_ref, b_ref, a_ref, bt_ref, out_ref):
    """One batch element: 1x1 conv (+bias) then separable bilinear resize.

    x_ref:   (1, H, Cin, W)         bf16   input block (W in lanes)
    w_ref:   (Cout, Cin)            bf16   conv1 weight
    b_ref:   (1, Cout, 1)           f32    conv1 bias
    a_ref:   (Hout, H)              bf16   H-axis interpolation matrix
    bt_ref:  (W, Wout)              bf16   W-axis interpolation matrix (transposed)
    out_ref: (1, Cout, Hout, Wout)  f32    NCHW output block (lane-dense Wout)
    """
    x = x_ref[0]                               # (H, Cin, W)
    H, Cin, W = x.shape
    w = w_ref[...]                             # (Cout, Cin)
    Cout = w.shape[0]
    a = a_ref[...]                             # (Hout, H)
    bt = bt_ref[...]                           # (W, Wout)

    # --- 1x1 conv: channel contraction batched over image rows, on the MXU.
    wb = jnp.broadcast_to(w[None], (H, Cout, Cin))
    y = lax.dot_general(wb, x, (((2,), (1,)), ((0,), (0,))),
                        preferred_element_type=jnp.float32)        # (H, Cout, W)
    y = y + b_ref[...]                                              # bias (f32)

    # --- separable bilinear resize, one label (output channel) at a time.
    # Cout == NoLabels is small & static; each label is two lane-dense 2-D MXU
    # matmuls: (H,W)@(W,Wout) then (Hout,H)@(H,Wout), f32 accumulation.
    for c in range(Cout):
        y_c = y[:, c, :].astype(jnp.bfloat16)                       # (H, W)
        z_c = jnp.dot(y_c, bt, preferred_element_type=jnp.float32)  # (H, Wout)
        o_c = jnp.dot(a, z_c.astype(jnp.bfloat16),
                      preferred_element_type=jnp.float32)           # (Hout, Wout)
        out_ref[0, c] = o_c


def flow_single_scale_forward(x_nchw, weight, bias, res_size):
    """FlowModule_SingleScale.forward: bilinear-upsample(conv1x1(x)) to res_size.

    x_nchw: (N, Cin, H, W) f32 (PyTorch layout)
    weight: (NoLabels, Cin) f32  (== conv1.weight[:, :, 0, 0])
    bias:   (NoLabels,) f32
    res_size: (Hout, Wout) static ints
    returns (N, NoLabels, Hout, Wout) f32, NCHW.
    """
    N, Cin, H, W = x_nchw.shape
    Cout = weight.shape[0]
    Hout, Wout = int(res_size[0]), int(res_size[1])

    a = _bilinear_matrix(H, Hout).astype(jnp.bfloat16)       # (Hout, H)
    bt = _bilinear_matrix(W, Wout).T.astype(jnp.bfloat16)    # (W, Wout)

    # Only the small pre-upsample input is permuted; the big output is written
    # directly in NCHW by the kernel (no output transpose / extra HBM pass).
    xt = jnp.transpose(x_nchw, (0, 2, 1, 3)).astype(jnp.bfloat16)   # (N, H, Cin, W)
    w_bf = weight.astype(jnp.bfloat16)
    b3 = bias.reshape(1, Cout, 1).astype(jnp.float32)

    # Explicit VMEM budget: double-buffered in/out blocks + resident operands
    # + in-kernel intermediates, with headroom.
    blk = H * Cin * W * 2 + Cout * Hout * Wout * 4
    oper = (Cout * Cin + Hout * H + W * Wout) * 2 + Cout * 4
    interm = H * Cout * Cin * 2 + H * Cout * W * 4 + (H * Wout + Hout * Wout) * 4 * 2
    vmem_limit = int(min(96 * 2 ** 20,
                         max(8 * 2 ** 20, 4 * (2 * blk + oper + interm))))

    out = pl.pallas_call(
        _flow_kernel,
        out_shape=jax.ShapeDtypeStruct((N, Cout, Hout, Wout), jnp.float32),
        grid_spec=pltpu.PrefetchScalarGridSpec(
            num_scalar_prefetch=0,
            grid=(N,),
            in_specs=[
                pl.BlockSpec((1, H, Cin, W), lambda b: (b, 0, 0, 0)),
                pl.BlockSpec((Cout, Cin), lambda b: (0, 0)),
                pl.BlockSpec((1, Cout, 1), lambda b: (0, 0, 0)),
                pl.BlockSpec((Hout, H), lambda b: (0, 0)),
                pl.BlockSpec((W, Wout), lambda b: (0, 0)),
            ],
            out_specs=pl.BlockSpec((1, Cout, Hout, Wout), lambda b: (b, 0, 0, 0)),
        ),
        compiler_params=pltpu.CompilerParams(
            dimension_semantics=("parallel",),
            vmem_limit_bytes=vmem_limit,
        ),
    )(xt, w_bf, b3, a, bt)
    return out


def reference_forward(x_nchw, weight, bias, res_size):
    """Plain-JAX reference: 1x1 conv + jax.image.resize bilinear (half-pixel)."""
    y = jnp.einsum('nchw,oc->nohw', x_nchw, weight,
                   precision=lax.Precision.HIGHEST)
    y = y + bias[None, :, None, None]
    N, Cout = y.shape[0], y.shape[1]
    return jax.image.resize(y, (N, Cout, int(res_size[0]), int(res_size[1])),
                            method='bilinear', antialias=False)


if __name__ == "__main__":
    # FlowModule_SingleScale(input_channels=16, NoLabels=8); res_size=(37, 41).
    N, Cin, H, W = 2, 16, 16, 16
    NoLabels = 8
    res_size = (37, 41)

    key = jax.random.PRNGKey(0)
    kx, kw, kb = jax.random.split(key, 3)
    x = jax.random.normal(kx, (N, Cin, H, W), jnp.float32)
    weight = 0.1 * jax.random.normal(kw, (NoLabels, Cin), jnp.float32)
    bias = 0.1 * jax.random.normal(kb, (NoLabels,), jnp.float32)

    out = jax.block_until_ready(flow_single_scale_forward(x, weight, bias, res_size))
    assert out.shape == (N, NoLabels, res_size[0], res_size[1])

    ref = jax.block_until_ready(reference_forward(x, weight, bias, res_size))
    max_err = float(jnp.max(jnp.abs(out - ref)))
    # Tolerance accounts for bf16 MXU operands (f32 accumulation).
    assert jnp.allclose(out, ref, atol=2e-2, rtol=2e-2), f"max abs err = {max_err}"
    print("KERNEL_OK")
</pallas_src>

<mosaic_0001>
module attributes {stable_mosaic.version = 11 : i64} {
  func.func @_flow_kernel(%arg0: i32, %arg1: memref<1x16x16x16xbf16, #tpu.memory_space<vmem>>, %arg2: memref<8x16xbf16, #tpu.memory_space<vmem>>, %arg3: memref<1x8x1xf32, #tpu.memory_space<vmem>>, %arg4: memref<37x16xbf16, #tpu.memory_space<vmem>>, %arg5: memref<16x41xbf16, #tpu.memory_space<vmem>>, %arg6: memref<1x8x37x41xf32, #tpu.memory_space<vmem>>) attributes {dimension_semantics = [#tpu.dimension_semantics<parallel>], iteration_bounds = array<i64: 2>, scalar_prefetch = 0 : i64, scratch_operands = 0 : i64, tpu.core_type = #tpu.core_type<tc>, window_params = [{transform_indices = @transform_0, window_bounds = array<i64: 1, 16, 16, 16>}, {pipeline_mode = #tpu.pipeline_mode<synchronous>, transform_indices = @transform_1, window_bounds = array<i64: 8, 16>}, {pipeline_mode = #tpu.pipeline_mode<synchronous>, transform_indices = @transform_2, window_bounds = array<i64: 1, 8, 1>}, {pipeline_mode = #tpu.pipeline_mode<synchronous>, transform_indices = @transform_3, window_bounds = array<i64: 37, 16>}, {pipeline_mode = #tpu.pipeline_mode<synchronous>, transform_indices = @transform_4, window_bounds = array<i64: 16, 41>}, {transform_indices = @transform_5, window_bounds = array<i64: 1, 8, 37, 41>}]} {
    %c0 = arith.constant 0 : index
    %c0_0 = arith.constant 0 : index
    %c0_1 = arith.constant 0 : index
    %c0_2 = arith.constant 0 : index
    %0 = vector.load %arg1[%c0, %c0_0, %c0_1, %c0_2] : memref<1x16x16x16xbf16, #tpu.memory_space<vmem>>, vector<1x16x16x16xbf16>
    %1 = vector.shape_cast %0 : vector<1x16x16x16xbf16> to vector<16x16x16xbf16>
    %c0_3 = arith.constant 0 : index
    %c0_4 = arith.constant 0 : index
    %2 = vector.load %arg2[%c0_3, %c0_4] : memref<8x16xbf16, #tpu.memory_space<vmem>>, vector<8x16xbf16>
    %c0_5 = arith.constant 0 : index
    %c0_6 = arith.constant 0 : index
    %3 = vector.load %arg4[%c0_5, %c0_6] : memref<37x16xbf16, #tpu.memory_space<vmem>>, vector<37x16xbf16>
    %c0_7 = arith.constant 0 : index
    %c0_8 = arith.constant 0 : index
    %4 = vector.load %arg5[%c0_7, %c0_8] : memref<16x41xbf16, #tpu.memory_space<vmem>>, vector<16x41xbf16>
    %5 = vector.shape_cast %2 : vector<8x16xbf16> to vector<1x8x16xbf16>
    %6 = vector.shape_cast %5 : vector<1x8x16xbf16> to vector<1x8x16xbf16>
    %7 = vector.broadcast %6 : vector<1x8x16xbf16> to vector<16x8x16xbf16>
    %cst = arith.constant dense<0.000000e+00> : vector<16x8x16xf32>
    %8 = tpu.matmul %7, %1, %cst {dimension_numbers = #tpu.dot_dimension_numbers<[2], [1], [1], [2], [0, 0, 0, 1, 1, 2], [0], [0]>} : vector<16x8x16xbf16>, vector<16x16x16xbf16>, vector<16x8x16xf32> -> vector<16x8x16xf32>
    %c0_9 = arith.constant 0 : index
    %c0_10 = arith.constant 0 : index
    %c0_11 = arith.constant 0 : index
    %9 = vector.load %arg3[%c0_9, %c0_10, %c0_11] : memref<1x8x1xf32, #tpu.memory_space<vmem>>, vector<1x8x1xf32>
    %10 = vector.broadcast %9 : vector<1x8x1xf32> to vector<16x8x16xf32>
    %11 = arith.addf %8, %10 : vector<16x8x16xf32>
    %12 = vector.extract_strided_slice %11 {offsets = [0, 0, 0], sizes = [16, 1, 16], strides = [1, 1, 1]} : vector<16x8x16xf32> to vector<16x1x16xf32>
    %13 = vector.shape_cast %12 : vector<16x1x16xf32> to vector<16x16xf32>
    %14 = arith.truncf %13 : vector<16x16xf32> to vector<16x16xbf16>
    %cst_12 = arith.constant dense<0.000000e+00> : vector<16x41xf32>
    %15 = tpu.matmul %14, %4, %cst_12 {dimension_numbers = #tpu.dot_dimension_numbers<[1], [0], [0], [1], [0, 0, 1, 1], [], []>} : vector<16x16xbf16>, vector<16x41xbf16>, vector<16x41xf32> -> vector<16x41xf32>
    %16 = arith.truncf %15 : vector<16x41xf32> to vector<16x41xbf16>
    %cst_13 = arith.constant dense<0.000000e+00> : vector<37x41xf32>
    %17 = tpu.matmul %3, %16, %cst_13 {dimension_numbers = #tpu.dot_dimension_numbers<[1], [0], [0], [1], [0, 0, 1, 1], [], []>} : vector<37x16xbf16>, vector<16x41xbf16>, vector<37x41xf32> -> vector<37x41xf32>
    %c0_14 = arith.constant 0 : index
    %c0_15 = arith.constant 0 : index
    %c0_16 = arith.constant 0 : index
    %c0_17 = arith.constant 0 : index
    %18 = vector.load %arg6[%c0_14, %c0_15, %c0_16, %c0_17] : memref<1x8x37x41xf32, #tpu.memory_space<vmem>>, vector<1x1x37x41xf32>
    %19 = vector.shape_cast %18 : vector<1x1x37x41xf32> to vector<37x41xf32>
    %20 = vector.shape_cast %17 : vector<37x41xf32> to vector<1x1x37x41xf32>
    tpu.vector_store %arg6[%c0_14, %c0_15, %c0_16, %c0_17], %20 {strides = array<i32>} : memref<1x8x37x41xf32, #tpu.memory_space<vmem>>, vector<1x1x37x41xf32>,
    %21 = vector.extract_strided_slice %11 {offsets = [0, 1, 0], sizes = [16, 1, 16], strides = [1, 1, 1]} : vector<16x8x16xf32> to vector<16x1x16xf32>
    %22 = vector.shape_cast %21 : vector<16x1x16xf32> to vector<16x16xf32>
    %23 = arith.truncf %22 : vector<16x16xf32> to vector<16x16xbf16>
    %cst_18 = arith.constant dense<0.000000e+00> : vector<16x41xf32>
    %24 = tpu.matmul %23, %4, %cst_18 {dimension_numbers = #tpu.dot_dimension_numbers<[1], [0], [0], [1], [0, 0, 1, 1], [], []>} : vector<16x16xbf16>, vector<16x41xbf16>, vector<16x41xf32> -> vector<16x41xf32>
    %25 = arith.truncf %24 : vector<16x41xf32> to vector<16x41xbf16>
    %cst_19 = arith.constant dense<0.000000e+00> : vector<37x41xf32>
    %26 = tpu.matmul %3, %25, %cst_19 {dimension_numbers = #tpu.dot_dimension_numbers<[1], [0], [0], [1], [0, 0, 1, 1], [], []>} : vector<37x16xbf16>, vector<16x41xbf16>, vector<37x41xf32> -> vector<37x41xf32>
    %c0_20 = arith.constant 0 : index
    %c1 = arith.constant 1 : index
    %c0_21 = arith.constant 0 : index
    %c0_22 = arith.constant 0 : index
    %27 = vector.load %arg6[%c0_20, %c1, %c0_21, %c0_22] : memref<1x8x37x41xf32, #tpu.memory_space<vmem>>, vector<1x1x37x41xf32>
    %28 = vector.shape_cast %27 : vector<1x1x37x41xf32> to vector<37x41xf32>
    %29 = vector.shape_cast %26 : vector<37x41xf32> to vector<1x1x37x41xf32>
    tpu.vector_store %arg6[%c0_20, %c1, %c0_21, %c0_22], %29 {strides = array<i32>} : memref<1x8x37x41xf32, #tpu.memory_space<vmem>>, vector<1x1x37x41xf32>,
    %30 = vector.extract_strided_slice %11 {offsets = [0, 2, 0], sizes = [16, 1, 16], strides = [1, 1, 1]} : vector<16x8x16xf32> to vector<16x1x16xf32>
    %31 = vector.shape_cast %30 : vector<16x1x16xf32> to vector<16x16xf32>
    %32 = arith.truncf %31 : vector<16x16xf32> to vector<16x16xbf16>
    %cst_23 = arith.constant dense<0.000000e+00> : vector<16x41xf32>
    %33 = tpu.matmul %32, %4, %cst_23 {dimension_numbers = #tpu.dot_dimension_numbers<[1], [0], [0], [1], [0, 0, 1, 1], [], []>} : vector<16x16xbf16>, vector<16x41xbf16>, vector<16x41xf32> -> vector<16x41xf32>
    %34 = arith.truncf %33 : vector<16x41xf32> to vector<16x41xbf16>
    %cst_24 = arith.constant dense<0.000000e+00> : vector<37x41xf32>
    %35 = tpu.matmul %3, %34, %cst_24 {dimension_numbers = #tpu.dot_dimension_numbers<[1], [0], [0], [1], [0, 0, 1, 1], [], []>} : vector<37x16xbf16>, vector<16x41xbf16>, vector<37x41xf32> -> vector<37x41xf32>
    %c0_25 = arith.constant 0 : index
    %c2 = arith.constant 2 : index
    %c0_26 = arith.constant 0 : index
    %c0_27 = arith.constant 0 : index
    %36 = vector.load %arg6[%c0_25, %c2, %c0_26, %c0_27] : memref<1x8x37x41xf32, #tpu.memory_space<vmem>>, vector<1x1x37x41xf32>
    %37 = vector.shape_cast %36 : vector<1x1x37x41xf32> to vector<37x41xf32>
    %38 = vector.shape_cast %35 : vector<37x41xf32> to vector<1x1x37x41xf32>
    tpu.vector_store %arg6[%c0_25, %c2, %c0_26, %c0_27], %38 {strides = array<i32>} : memref<1x8x37x41xf32, #tpu.memory_space<vmem>>, vector<1x1x37x41xf32>,
    %39 = vector.extract_strided_slice %11 {offsets = [0, 3, 0], sizes = [16, 1, 16], strides = [1, 1, 1]} : vector<16x8x16xf32> to vector<16x1x16xf32>
    %40 = vector.shape_cast %39 : vector<16x1x16xf32> to vector<16x16xf32>
    %41 = arith.truncf %40 : vector<16x16xf32> to vector<16x16xbf16>
    %cst_28 = arith.constant dense<0.000000e+00> : vector<16x41xf32>
    %42 = tpu.matmul %41, %4, %cst_28 {dimension_numbers = #tpu.dot_dimension_numbers<[1], [0], [0], [1], [0, 0, 1, 1], [], []>} : vector<16x16xbf16>, vector<16x41xbf16>, vector<16x41xf32> -> vector<16x41xf32>
    %43 = arith.truncf %42 : vector<16x41xf32> to vector<16x41xbf16>
    %cst_29 = arith.constant dense<0.000000e+00> : vector<37x41xf32>
    %44 = tpu.matmul %3, %43, %cst_29 {dimension_numbers = #tpu.dot_dimension_numbers<[1], [0], [0], [1], [0, 0, 1, 1], [], []>} : vector<37x16xbf16>, vector<16x41xbf16>, vector<37x41xf32> -> vector<37x41xf32>
    %c0_30 = arith.constant 0 : index
    %c3 = arith.constant 3 : index
    %c0_31 = arith.constant 0 : index
    %c0_32 = arith.constant 0 : index
    %45 = vector.load %arg6[%c0_30, %c3, %c0_31, %c0_32] : memref<1x8x37x41xf32, #tpu.memory_space<vmem>>, vector<1x1x37x41xf32>
    %46 = vector.shape_cast %45 : vector<1x1x37x41xf32> to vector<37x41xf32>
    %47 = vector.shape_cast %44 : vector<37x41xf32> to vector<1x1x37x41xf32>
    tpu.vector_store %arg6[%c0_30, %c3, %c0_31, %c0_32], %47 {strides = array<i32>} : memref<1x8x37x41xf32, #tpu.memory_space<vmem>>, vector<1x1x37x41xf32>,
    %48 = vector.extract_strided_slice %11 {offsets = [0, 4, 0], sizes = [16, 1, 16], strides = [1, 1, 1]} : vector<16x8x16xf32> to vector<16x1x16xf32>
    %49 = vector.shape_cast %48 : vector<16x1x16xf32> to vector<16x16xf32>
    %50 = arith.truncf %49 : vector<16x16xf32> to vector<16x16xbf16>
    %cst_33 = arith.constant dense<0.000000e+00> : vector<16x41xf32>
    %51 = tpu.matmul %50, %4, %cst_33 {dimension_numbers = #tpu.dot_dimension_numbers<[1], [0], [0], [1], [0, 0, 1, 1], [], []>} : vector<16x16xbf16>, vector<16x41xbf16>, vector<16x41xf32> -> vector<16x41xf32>
    %52 = arith.truncf %51 : vector<16x41xf32> to vector<16x41xbf16>
    %cst_34 = arith.constant dense<0.000000e+00> : vector<37x41xf32>
    %53 = tpu.matmul %3, %52, %cst_34 {dimension_numbers = #tpu.dot_dimension_numbers<[1], [0], [0], [1], [0, 0, 1, 1], [], []>} : vector<37x16xbf16>, vector<16x41xbf16>, vector<37x41xf32> -> vector<37x41xf32>
    %c0_35 = arith.constant 0 : index
    %c4 = arith.constant 4 : index
    %c0_36 = arith.constant 0 : index
    %c0_37 = arith.constant 0 : index
    %54 = vector.load %arg6[%c0_35, %c4, %c0_36, %c0_37] : memref<1x8x37x41xf32, #tpu.memory_space<vmem>>, vector<1x1x37x41xf32>
    %55 = vector.shape_cast %54 : vector<1x1x37x41xf32> to vector<37x41xf32>
    %56 = vector.shape_cast %53 : vector<37x41xf32> to vector<1x1x37x41xf32>
    tpu.vector_store %arg6[%c0_35, %c4, %c0_36, %c0_37], %56 {strides = array<i32>} : memref<1x8x37x41xf32, #tpu.memory_space<vmem>>, vector<1x1x37x41xf32>,
    %57 = vector.extract_strided_slice %11 {offsets = [0, 5, 0], sizes = [16, 1, 16], strides = [1, 1, 1]} : vector<16x8x16xf32> to vector<16x1x16xf32>
    %58 = vector.shape_cast %57 : vector<16x1x16xf32> to vector<16x16xf32>
    %59 = arith.truncf %58 : vector<16x16xf32> to vector<16x16xbf16>
    %cst_38 = arith.constant dense<0.000000e+00> : vector<16x41xf32>
    %60 = tpu.matmul %59, %4, %cst_38 {dimension_numbers = #tpu.dot_dimension_numbers<[1], [0], [0], [1], [0, 0, 1, 1], [], []>} : vector<16x16xbf16>, vector<16x41xbf16>, vector<16x41xf32> -> vector<16x41xf32>
    %61 = arith.truncf %60 : vector<16x41xf32> to vector<16x41xbf16>
    %cst_39 = arith.constant dense<0.000000e+00> : vector<37x41xf32>
    %62 = tpu.matmul %3, %61, %cst_39 {dimension_numbers = #tpu.dot_dimension_numbers<[1], [0], [0], [1], [0, 0, 1, 1], [], []>} : vector<37x16xbf16>, vector<16x41xbf16>, vector<37x41xf32> -> vector<37x41xf32>
    %c0_40 = arith.constant 0 : index
    %c5 = arith.constant 5 : index
    %c0_41 = arith.constant 0 : index
    %c0_42 = arith.constant 0 : index
    %63 = vector.load %arg6[%c0_40, %c5, %c0_41, %c0_42] : memref<1x8x37x41xf32, #tpu.memory_space<vmem>>, vector<1x1x37x41xf32>
    %64 = vector.shape_cast %63 : vector<1x1x37x41xf32> to vector<37x41xf32>
    %65 = vector.shape_cast %62 : vector<37x41xf32> to vector<1x1x37x41xf32>
    tpu.vector_store %arg6[%c0_40, %c5, %c0_41, %c0_42], %65 {strides = array<i32>} : memref<1x8x37x41xf32, #tpu.memory_space<vmem>>, vector<1x1x37x41xf32>,
    %66 = vector.extract_strided_slice %11 {offsets = [0, 6, 0], sizes = [16, 1, 16], strides = [1, 1, 1]} : vector<16x8x16xf32> to vector<16x1x16xf32>
    %67 = vector.shape_cast %66 : vector<16x1x16xf32> to vector<16x16xf32>
    %68 = arith.truncf %67 : vector<16x16xf32> to vector<16x16xbf16>
    %cst_43 = arith.constant dense<0.000000e+00> : vector<16x41xf32>
    %69 = tpu.matmul %68, %4, %cst_43 {dimension_numbers = #tpu.dot_dimension_numbers<[1], [0], [0], [1], [0, 0, 1, 1], [], []>} : vector<16x16xbf16>, vector<16x41xbf16>, vector<16x41xf32> -> vector<16x41xf32>
    %70 = arith.truncf %69 : vector<16x41xf32> to vector<16x41xbf16>
    %cst_44 = arith.constant dense<0.000000e+00> : vector<37x41xf32>
    %71 = tpu.matmul %3, %70, %cst_44 {dimension_numbers = #tpu.dot_dimension_numbers<[1], [0], [0], [1], [0, 0, 1, 1], [], []>} : vector<37x16xbf16>, vector<16x41xbf16>, vector<37x41xf32> -> vector<37x41xf32>
    %c0_45 = arith.constant 0 : index
    %c6 = arith.constant 6 : index
    %c0_46 = arith.constant 0 : index
    %c0_47 = arith.constant 0 : index
    %72 = vector.load %arg6[%c0_45, %c6, %c0_46, %c0_47] : memref<1x8x37x41xf32, #tpu.memory_space<vmem>>, vector<1x1x37x41xf32>
    %73 = vector.shape_cast %72 : vector<1x1x37x41xf32> to vector<37x41xf32>
    %74 = vector.shape_cast %71 : vector<37x41xf32> to vector<1x1x37x41xf32>
    tpu.vector_store %arg6[%c0_45, %c6, %c0_46, %c0_47], %74 {strides = array<i32>} : memref<1x8x37x41xf32, #tpu.memory_space<vmem>>, vector<1x1x37x41xf32>,
    %75 = vector.extract_strided_slice %11 {offsets = [0, 7, 0], sizes = [16, 1, 16], strides = [1, 1, 1]} : vector<16x8x16xf32> to vector<16x1x16xf32>
    %76 = vector.shape_cast %75 : vector<16x1x16xf32> to vector<16x16xf32>
    %77 = arith.truncf %76 : vector<16x16xf32> to vector<16x16xbf16>
    %cst_48 = arith.constant dense<0.000000e+00> : vector<16x41xf32>
    %78 = tpu.matmul %77, %4, %cst_48 {dimension_numbers = #tpu.dot_dimension_numbers<[1], [0], [0], [1], [0, 0, 1, 1], [], []>} : vector<16x16xbf16>, vector<16x41xbf16>, vector<16x41xf32> -> vector<16x41xf32>
    %79 = arith.truncf %78 : vector<16x41xf32> to vector<16x41xbf16>
    %cst_49 = arith.constant dense<0.000000e+00> : vector<37x41xf32>
    %80 = tpu.matmul %3, %79, %cst_49 {dimension_numbers = #tpu.dot_dimension_numbers<[1], [0], [0], [1], [0, 0, 1, 1], [], []>} : vector<37x16xbf16>, vector<16x41xbf16>, vector<37x41xf32> -> vector<37x41xf32>
    %c0_50 = arith.constant 0 : index
    %c7 = arith.constant 7 : index
    %c0_51 = arith.constant 0 : index
    %c0_52 = arith.constant 0 : index
    %81 = vector.load %arg6[%c0_50, %c7, %c0_51, %c0_52] : memref<1x8x37x41xf32, #tpu.memory_space<vmem>>, vector<1x1x37x41xf32>
    %82 = vector.shape_cast %81 : vector<1x1x37x41xf32> to vector<37x41xf32>
    %83 = vector.shape_cast %80 : vector<37x41xf32> to vector<1x1x37x41xf32>
    tpu.vector_store %arg6[%c0_50, %c7, %c0_51, %c0_52], %83 {strides = array<i32>} : memref<1x8x37x41xf32, #tpu.memory_space<vmem>>, vector<1x1x37x41xf32>,
    return
  }
  func.func @transform_0(%arg0: i32) -> (i32, i32, i32, i32) {
    %c0_i32 = arith.constant 0 : i32
    %c0_i32_0 = arith.constant 0 : i32
    %c0_i32_1 = arith.constant 0 : i32
    %c0_i32_2 = arith.constant 0 : i32
    return %arg0, %c0_i32, %c0_i32_0, %c0_i32_1 : i32, i32, i32, i32
  }
  func.func @transform_1(%arg0: i32) -> (i32, i32) {
    %c0_i32 = arith.constant 0 : i32
    %c0_i32_0 = arith.constant 0 : i32
    %c0_i32_1 = arith.constant 0 : i32
    return %c0_i32, %c0_i32_0 : i32, i32
  }
  func.func @transform_2(%arg0: i32) -> (i32, i32, i32) {
    %c0_i32 = arith.constant 0 : i32
    %c0_i32_0 = arith.constant 0 : i32
    %c0_i32_1 = arith.constant 0 : i32
    %c0_i32_2 = arith.constant 0 : i32
    return %c0_i32, %c0_i32_0, %c0_i32_1 : i32, i32, i32
  }
  func.func @transform_3(%arg0: i32) -> (i32, i32) {
    %c0_i32 = arith.constant 0 : i32
    %c0_i32_0 = arith.constant 0 : i32
    %c0_i32_1 = arith.constant 0 : i32
    return %c0_i32, %c0_i32_0 : i32, i32
  }
  func.func @transform_4(%arg0: i32) -> (i32, i32) {
    %c0_i32 = arith.constant 0 : i32
    %c0_i32_0 = arith.constant 0 : i32
    %c0_i32_1 = arith.constant 0 : i32
    return %c0_i32, %c0_i32_0 : i32, i32
  }
  func.func @transform_5(%arg0: i32) -> (i32, i32, i32, i32) {
    %c0_i32 = arith.constant 0 : i32
    %c0_i32_0 = arith.constant 0 : i32
    %c0_i32_1 = arith.constant 0 : i32
    %c0_i32_2 = arith.constant 0 : i32
    return %arg0, %c0_i32, %c0_i32_0, %c0_i32_1 : i32, i32, i32, i32
  }
}

</mosaic_0001>

<llo_original>
// kernel: tpu_custom_call.1
$region0: #{tpu_custom_call.1}
  #allocation0 [shape = 'u32[]', space=smem, size = 0x4, offset = 0x4, fixed_abs, tag = 'smem constant byte address 0x4 - core index']
  #allocation1 [shape = 'u32[144,128]{1,0:T(1,128)}', space=vmem, size = 0x12000, scoped, tag = 'internal scratch']
  %s0 = inlined_call_operand.hbm [shape: bf16[2,16,16,16], index: 0, kind: input, shape index: {}]
  %s1 = inlined_call_operand.vmem [shape: bf16[8,16], index: 1, kind: input, shape index: {}]
  %s2 = inlined_call_operand.vmem [shape: f32[1,8,1], index: 2, kind: input, shape index: {}]
  %s3 = inlined_call_operand.vmem [shape: bf16[37,16], index: 3, kind: input, shape index: {}]
  %s4 = inlined_call_operand.vmem [shape: bf16[16,41], index: 4, kind: input, shape index: {}]
  %s5 = inlined_call_operand.vmem [shape: f32[2,8,37,41], index: 5, kind: output, shape index: {}]
  %s6 = sld [smem:[#allocation0]]
  $region57: #{tpu_custom_call.1} parent=0
    _
  %s8 = ssub.s32 1, %s6
  %s9 = scalar_select 0, %s8, %s6
  $region1: #{tpu_custom_call.1} parent=0
    #allocation2 [shape = 'u8[131072]{0}', space=vmem, size = 0x20000, scoped, tag = 'input window, operand 0']
    #allocation3 [shape = 's32[2]{0}', space=sflag, size = 0x8, scoped, tag = 'scoped memory for tpu_custom_call.1']
    %10 = vsyncpa [#allocation3], 0
    %s11 = scalar_lea.sflag [#allocation3], 1
    %12 = vsyncpa %s11, 0
    loop: start=0, step=1, limit=4
    $region2: #{tpu_custom_call.1} parent=1 // loop_pre_header
      _
    $region3: #{tpu_custom_call.1} parent=1 // loop_header
      %s14 = sphi 0, %s18
      %p15 = scmp.ge.s32.totalorder %s14, 4
      %s24 = sphi 0, %s26
      %s27 = sphi 0, %s24
      %s28 = sphi 0, %s27
      %s44 = sphi 0, %s28
      %s48 = sphi 0, %s48
      %s50 = sphi 0, %s48
      %s51 = sphi 0, %s50
      %s65 = sphi 0, %s51
      %s69 = sphi 0, %s69
      %s71 = sphi 0, %s69
      %s72 = sphi 0, %s71
      %s86 = sphi 0, %s72
      %s90 = sphi 0, %s90
      %s92 = sphi 0, %s90
      %s93 = sphi 0, %s92
      %s107 = sphi 0, %s93
      %s111 = sphi 0, %s111
      %s113 = sphi 0, %s111
      %s114 = sphi 0, %s113
      %s128 = sphi 0, %s114
      %s134 = sphi 0, %s136
      %s137 = sphi 0, %s134
      %s138 = sphi 0, %s137
      %s154 = sphi 0, %s138
    $region4: #{tpu_custom_call.1} parent=1 // loop_header_branch
      %17 = sbr.rel (%p15) target = $region8
    $region5: #{tpu_custom_call.1} parent=1 // loop_body
      %s19 = ssub.s32 %s14, 1
      %s20 = ssub.s32 %s14, 2
      %s21 = sadd.s32 %s14, 1
      %s22 = ssub.s32 %s14, %s21
      %p23 = scmp.eq.s32.totalorder %s22, 0
      %s25 = sadd.s32 %s24, 1
      %s26 = scalar_select %p23, %s24, %s25
      %p29 = pneg %p23
      %p30 = scmp.eq.s32.totalorder %s14, 1
      %p31 = por %p29, %p30
      %p32 = scmp.ne.s32.totalorder %s24, %s27
      %p33 = scmp.eq.s32.totalorder %s14, 0
      %p34 = por %p32, %p33
      %p35 = scmp.ne.s32.totalorder %s24, %s27
      %p36 = scmp.eq.s32.totalorder %s19, 1
      %p37 = por %p35, %p36
      %p38 = scmp.ne.s32.totalorder %s27, %s28
      %p39 = scmp.eq.s32.totalorder %s19, 0
      %p40 = por %p38, %p39
      %p41 = scmp.ne.s32.totalorder %s27, %s28
      %p42 = scmp.eq.s32.totalorder %s20, 1
      %p43 = por %p41, %p42
      %p45 = scmp.ne.s32.totalorder %s28, %s44
      %p46 = scmp.eq.s32.totalorder %s20, 0
      %p47 = por %p45, %p46
      %s49 = sadd.s32 %s48, 1
      %p52 = scmp.eq.s32.totalorder %s14, 1
      %p53 = scmp.ne.s32.totalorder %s48, %s50
      %p54 = scmp.eq.s32.totalorder %s14, 0
      %p55 = por %p53, %p54
      %p56 = scmp.ne.s32.totalorder %s48, %s50
      %p57 = scmp.eq.s32.totalorder %s19, 1
      %p58 = por %p56, %p57
      %p59 = scmp.ne.s32.totalorder %s50, %s51
      %p60 = scmp.eq.s32.totalorder %s19, 0
      %p61 = por %p59, %p60
      %p62 = scmp.ne.s32.totalorder %s50, %s51
      %p63 = scmp.eq.s32.totalorder %s20, 1
      %p64 = por %p62, %p63
      %p66 = scmp.ne.s32.totalorder %s51, %s65
      %p67 = scmp.eq.s32.totalorder %s20, 0
      %p68 = por %p66, %p67
      %s70 = sadd.s32 %s69, 1
      %p73 = scmp.eq.s32.totalorder %s14, 1
      %p74 = scmp.ne.s32.totalorder %s69, %s71
      %p75 = scmp.eq.s32.totalorder %s14, 0
      %p76 = por %p74, %p75
      %p77 = scmp.ne.s32.totalorder %s69, %s71
      %p78 = scmp.eq.s32.totalorder %s19, 1
      %p79 = por %p77, %p78
      %p80 = scmp.ne.s32.totalorder %s71, %s72
      %p81 = scmp.eq.s32.totalorder %s19, 0
      %p82 = por %p80, %p81
      %p83 = scmp.ne.s32.totalorder %s71, %s72
      %p84 = scmp.eq.s32.totalorder %s20, 1
      %p85 = por %p83, %p84
      %p87 = scmp.ne.s32.totalorder %s72, %s86
      %p88 = scmp.eq.s32.totalorder %s20, 0
      %p89 = por %p87, %p88
      %s91 = sadd.s32 %s90, 1
      %p94 = scmp.eq.s32.totalorder %s14, 1
      %p95 = scmp.ne.s32.totalorder %s90, %s92
      %p96 = scmp.eq.s32.totalorder %s14, 0
      %p97 = por %p95, %p96
      %p98 = scmp.ne.s32.totalorder %s90, %s92
      %p99 = scmp.eq.s32.totalorder %s19, 1
      %p100 = por %p98, %p99
      %p101 = scmp.ne.s32.totalorder %s92, %s93
      %p102 = scmp.eq.s32.totalorder %s19, 0
      %p103 = por %p101, %p102
      %p104 = scmp.ne.s32.totalorder %s92, %s93
      %p105 = scmp.eq.s32.totalorder %s20, 1
      %p106 = por %p104, %p105
      %p108 = scmp.ne.s32.totalorder %s93, %s107
      %p109 = scmp.eq.s32.totalorder %s20, 0
      %p110 = por %p108, %p109
      %s112 = sadd.s32 %s111, 1
      %p115 = scmp.eq.s32.totalorder %s14, 1
      %p116 = scmp.ne.s32.totalorder %s111, %s113
      %p117 = scmp.eq.s32.totalorder %s14, 0
      %p118 = por %p116, %p117
      %p119 = scmp.ne.s32.totalorder %s111, %s113
      %p120 = scmp.eq.s32.totalorder %s19, 1
      %p121 = por %p119, %p120
      %p122 = scmp.ne.s32.totalorder %s113, %s114
      %p123 = scmp.eq.s32.totalorder %s19, 0
      %p124 = por %p122, %p123
      %p125 = scmp.ne.s32.totalorder %s113, %s114
      %p126 = scmp.eq.s32.totalorder %s20, 1
      %p127 = por %p125, %p126
      %p129 = scmp.ne.s32.totalorder %s114, %s128
      %p130 = scmp.eq.s32.totalorder %s20, 0
      %p131 = por %p129, %p130
      %s132 = ssub.s32 %s14, %s21
      %p133 = scmp.eq.s32.totalorder %s132, 0
      %s135 = sadd.s32 %s134, 1
      %s136 = scalar_select %p133, %s134, %s135
      %p139 = pneg %p133
      %p140 = scmp.eq.s32.totalorder %s14, 1
      %p141 = por %p139, %p140
      %p142 = scmp.ne.s32.totalorder %s134, %s137
      %p143 = scmp.eq.s32.totalorder %s14, 0
      %p144 = por %p142, %p143
      %p145 = scmp.ne.s32.totalorder %s134, %s137
      %p146 = scmp.eq.s32.totalorder %s19, 1
      %p147 = por %p145, %p146
      %p148 = scmp.ne.s32.totalorder %s137, %s138
      %p149 = scmp.eq.s32.totalorder %s19, 0
      %p150 = por %p148, %p149
      %p151 = scmp.ne.s32.totalorder %s137, %s138
      %p152 = scmp.eq.s32.totalorder %s20, 1
      %p153 = por %p151, %p152
      %p155 = scmp.ne.s32.totalorder %s138, %s154
      %p156 = scmp.eq.s32.totalorder %s20, 0
      %p157 = por %p155, %p156
      %p158 = scmp.le.s32.totalorder 1, %s14
      %p159 = scmp.lt.s32.totalorder %s14, 3
      %p160 = pnand %p158, %p159
      %p161 = pneg %p160
      // Predicated region
      $region9: #{tpu_custom_call.1} parent=5 // pred_check
        _
      $region10: #{tpu_custom_call.1} parent=5 // pred_check_branch
        %163 = sbr.rel (%p160) target = $region12
      $region11: #{tpu_custom_call.1} parent=5 // pred_region
        %s164 = ssub.s32 %s14, 1
        // Predicated region
        $region13: #{tpu_custom_call.1} parent=11 // pred_check
          %p165 = pneg %p61
        $region14: #{tpu_custom_call.1} parent=11 // pred_check_branch
          %167 = sbr.rel (%p165) target = $region16
        $region15: #{tpu_custom_call.1} parent=11 // pred_region
          _
        $region16: #{tpu_custom_call.1} parent=11 // pred_fallthru
          _
        // Predicated region
        $region17: #{tpu_custom_call.1} parent=11 // pred_check
          %p168 = pneg %p82
        $region18: #{tpu_custom_call.1} parent=11 // pred_check_branch
          %170 = sbr.rel (%p168) target = $region20
        $region19: #{tpu_custom_call.1} parent=11 // pred_region
          _
        $region20: #{tpu_custom_call.1} parent=11 // pred_fallthru
          _
        // Predicated region
        $region21: #{tpu_custom_call.1} parent=11 // pred_check
          %p171 = pneg %p103
        $region22: #{tpu_custom_call.1} parent=11 // pred_check_branch
          %173 = sbr.rel (%p171) target = $region24
        $region23: #{tpu_custom_call.1} parent=11 // pred_region
          _
        $region24: #{tpu_custom_call.1} parent=11 // pred_fallthru
          _
        // Predicated region
        $region25: #{tpu_custom_call.1} parent=11 // pred_check
          %p174 = pneg %p124
        $region26: #{tpu_custom_call.1} parent=11 // pred_check_branch
          %176 = sbr.rel (%p174) target = $region28
        $region27: #{tpu_custom_call.1} parent=11 // pred_region
          _
        $region28: #{tpu_custom_call.1} parent=11 // pred_fallthru
          _
      $region12: #{tpu_custom_call.1} parent=5 // pred_fallthru
        _
      %p177 = scmp.lt.s32.totalorder %s14, 2
      // Predicated region
      $region29: #{tpu_custom_call.1} parent=5 // pred_check
        %p178 = pneg %p177
      $region30: #{tpu_custom_call.1} parent=5 // pred_check_branch
        %180 = sbr.rel (%p178) target = $region32
      $region31: #{tpu_custom_call.1} parent=5 // pred_region
        // Predicated region
        $region33: #{tpu_custom_call.1} parent=31 // pred_check
          %p181 = pneg %p34
        $region34: #{tpu_custom_call.1} parent=31 // pred_check_branch
          %183 = sbr.rel (%p181) target = $region36
        $region35: #{tpu_custom_call.1} parent=31 // pred_region
          %s184 = sand.u32 %s24, 1
          %s185 = scalar_lea.sflag [#allocation3], %s184
          %s186 = sand.u32 %s24, 1
          %s187 = smul.addr %s186, 128
          %s188 = scalar_lea.vmem [#allocation2], %s187
          %s190 = ssub.s32 2048, 2048
          %191 = vsyncadd %s185, %s190
          %s192 = smul.addr %s14, 32
          %s193 = smul.addr %s192, 64
          %s194 = scalar_lea.hbm %s0, %s193
          %s195 = sshll.u32 %s188, 4
          %s196 = int_to_ptr.vmem [resolvable:$true] %s195
          %201 = dma.hbm_to_vmem [thread:$0]  %s194, 2048, %s196, %s185, 64, 64, 4
        $region36: #{tpu_custom_call.1} parent=31 // pred_fallthru
          _
      $region32: #{tpu_custom_call.1} parent=5 // pred_fallthru
        _
      %p202 = scmp.le.s32.totalorder 1, %s14
      %p203 = scmp.lt.s32.totalorder %s14, 3
      %p204 = pnand %p202, %p203
      %p205 = pneg %p204
      // Predicated region
      $region37: #{tpu_custom_call.1} parent=5 // pred_check
        _
      $region38: #{tpu_custom_call.1} parent=5 // pred_check_branch
        %207 = sbr.rel (%p204) target = $region40
      $region39: #{tpu_custom_call.1} parent=5 // pred_region
        %s208 = ssub.s32 %s14, 1
        %s209 = sand.u32 %s27, 1
        %s210 = scalar_lea.sflag [#allocation3], %s209
        %s211 = sand.u32 %s27, 1
        %s212 = smul.addr %s211, 128
        %s213 = scalar_lea.vmem [#allocation2], %s212
        // Predicated region
        $region41: #{tpu_custom_call.1} parent=39 // pred_check
          %p214 = pneg %p40
        $region42: #{tpu_custom_call.1} parent=39 // pred_check_branch
          %216 = sbr.rel (%p214) target = $region44
        $region43: #{tpu_custom_call.1} parent=39 // pred_region
          %217 = dma.done %s210, 2048
        $region44: #{tpu_custom_call.1} parent=39 // pred_fallthru
          _
        %s218 = sand.u32 %s27, 1
        %s219 = scalar_lea.sflag [#allocation3], %s218
        %s220 = sand.u32 %s27, 1
        %s221 = smul.addr %s220, 128
        %s222 = scalar_lea.vmem [#allocation2], %s221
        %p223 = pneg %p40
        %p224 = pneg %p37
        %p225 = pneg %p61
        %p226 = pneg %p58
        %p227 = pneg %p82
        %p228 = pneg %p79
        %p229 = pneg %p103
        %p230 = pneg %p100
        %p231 = pneg %p124
        %p232 = pneg %p121
        %p233 = pneg %p150
        %p234 = pneg %p147
        %p235 = scmp.lt.s32.totalorder %s19, 1
        %s236 = scalar_select %p235, %s19, 1
        %s237 = smul.addr %s236, 40
        %s238 = smul.addr %s237, 8
        %s239 = scalar_lea.vmem %s5, %s238
        %p240 = scmp.lt.s32.totalorder %s19, 1
        %s241 = scalar_select %p240, %s19, 1
        %s242 = smul.addr %s241, 40
        %s243 = smul.addr %s242, 8
        %s244 = scalar_lea.vmem %s5, %s243
        %v246 = vld [vmem:[%s213] sm:$0xf]
        %v247 = vld [vmem:[%s213 + $0x4] sm:$0xf]
        %v248 = vld [vmem:[%s213 + $0x8] sm:$0xf]
        %v249 = vld [vmem:[%s213 + $0xc] sm:$0xf]
        %v250 = vld [vmem:[%s213 + $0x10] sm:$0xf]
        %v251 = vld [vmem:[%s213 + $0x14] sm:$0xf]
        %v252 = vld [vmem:[%s213 + $0x18] sm:$0xf]
        %v253 = vld [vmem:[%s213 + $0x1c] sm:$0xf]
        %v254 = vld [vmem:[%s213 + $0x20] sm:$0xf]
        %v255 = vld [vmem:[%s213 + $0x24] sm:$0xf]
        %v256 = vld [vmem:[%s213 + $0x28] sm:$0xf]
        %v257 = vld [vmem:[%s213 + $0x2c] sm:$0xf]
        %v258 = vld [vmem:[%s213 + $0x30] sm:$0xf]
        %v259 = vld [vmem:[%s213 + $0x34] sm:$0xf]
        %v260 = vld [vmem:[%s213 + $0x38] sm:$0xf]
        %v261 = vld [vmem:[%s213 + $0x3c] sm:$0xf]
        %v262 = vld [vmem:[%s213 + $0x40] sm:$0xf]
        %v263 = vld [vmem:[%s213 + $0x44] sm:$0xf]
        %v264 = vld [vmem:[%s213 + $0x48] sm:$0xf]
        %v265 = vld [vmem:[%s213 + $0x4c] sm:$0xf]
        %v266 = vld [vmem:[%s213 + $0x50] sm:$0xf]
        %v267 = vld [vmem:[%s213 + $0x54] sm:$0xf]
        %v268 = vld [vmem:[%s213 + $0x58] sm:$0xf]
        %v269 = vld [vmem:[%s213 + $0x5c] sm:$0xf]
        %v270 = vld [vmem:[%s213 + $0x60] sm:$0xf]
        %v271 = vld [vmem:[%s213 + $0x64] sm:$0xf]
        %v272 = vld [vmem:[%s213 + $0x68] sm:$0xf]
        %v273 = vld [vmem:[%s213 + $0x6c] sm:$0xf]
        %v274 = vld [vmem:[%s213 + $0x70] sm:$0xf]
        %v275 = vld [vmem:[%s213 + $0x74] sm:$0xf]
        %v276 = vld [vmem:[%s213 + $0x78] sm:$0xf]
        %v277 = vld [vmem:[%s213 + $0x7c] sm:$0xf]
        %v278 = vld [vmem:[%s1] sm:$0xf]
        %v279 = vld [vmem:[%s3] sm:$0xf]
        %v280 = vld [vmem:[%s3 + $0x4] sm:$0xf]
        %v281 = vld [vmem:[%s3 + $0x8] sm:$0xf]
        %v282 = vld [vmem:[%s3 + $0xc] sm:$0xf]
        %v283 = vld [vmem:[%s3 + $0x10] sm:$0x7]
        %v284 = vld [vmem:[%s4] sm:$0xf]
        %v285 = vld [vmem:[%s4 + $0x4] sm:$0xf]
        %v286 = vld [vmem:[%s2] sm:$0xff]
        %288 = vset.pattern.permute.xlu0 0
        %289 = vperm.xlu0 %288, %v286
        %v290 = vpop.permute.xlu0 %289
        %v294 = vunpack.c.l.b16 %v246
        %v295 = vunpack.c.l.b16 %v247
        %v296 = vpack.c.b16 %v295, %v294
        %vm298 = vcmask 130048
        %v300 = vsel %vm298, %v278, 0
        %302 = vmatprep.subr.bf16.mxu0 0
        %303 = vmatpush1.bf16.msra.mxu0 %v296
        %304 = vmatprep.subr.bf16.mxu0 0
        %305 = vmatpush1.bf16.msra.mxu0 0
        %306 = vmatprep.subr.bf16.mxu0 0
        %307 = vmatpush1.bf16.msra.mxu0 0
        %308 = vmatprep.subr.bf16.mxu0 0
        %309 = vmatpush1.bf16.msra.mxu0 0
        %310 = vmatprep.subr.bf16.mxu0 0
        %311 = vmatpush1.bf16.msra.mxu0 0
        %312 = vmatprep.subr.bf16.mxu0 0
        %313 = vmatpush1.bf16.msra.mxu0 0
        %314 = vmatprep.subr.bf16.mxu0 0
        %315 = vmatpush1.bf16.msra.mxu0 0
        %316 = vmatprep.subr.bf16.mxu0 0
        %317 = vmatpush1.bf16.msra.mxu0 0
        %318 = vmatprep.subr.bf16.mxu0 0
        %319 = vmatpush1.bf16.msra.mxu0 0
        %320 = vmatprep.subr.bf16.mxu0 0
        %321 = vmatpush1.bf16.msra.mxu0 0
        %322 = vmatprep.subr.bf16.mxu0 0
        %323 = vmatpush1.bf16.msra.mxu0 0
        %324 = vmatprep.subr.bf16.mxu0 0
        %325 = vmatpush1.bf16.msra.mxu0 0
        %326 = vmatprep.subr.bf16.mxu0 0
        %327 = vmatpush1.bf16.msra.mxu0 0
        %328 = vmatprep.subr.bf16.mxu0 0
        %329 = vmatpush1.bf16.msra.mxu0 0
        %330 = vmatprep.subr.bf16.mxu0 0
        %331 = vmatpush1.bf16.msra.mxu0 0
        %332 = vmatprep.subr.bf16.mxu0 0
        %333 = vmatpush1.bf16.msra.mxu0 0
        %334 = vmatprep.mubr.bf16.mxu0 0
        %335 = vmatmul.mubr.bf16.gmra.mrb[0].mxu0 %v300
        %v336 = vpop.f32.mrb[0].mxu0
        %v337 = vadd.f32 %v290, %v336
        %v338 = vpop.f32.mrb[0].mxu0
        %v339 = vpop.f32.mrb[0].mxu0
        %v340 = vpop.f32.mrb[0].mxu0
        %341 = vdwg.mxu0
        %v344 = vunpack.c.l.b16 %v248
        %v345 = vunpack.c.l.b16 %v249
        %v346 = vpack.c.b16 %v345, %v344
        %348 = vmatprep.subr.bf16.mxu0 0
        %349 = vmatpush1.bf16.msra.mxu0 %v346
        %350 = vmatprep.subr.bf16.mxu0 0
        %351 = vmatpush1.bf16.msra.mxu0 0
        %352 = vmatprep.subr.bf16.mxu0 0
        %353 = vmatpush1.bf16.msra.mxu0 0
        %354 = vmatprep.subr.bf16.mxu0 0
        %355 = vmatpush1.bf16.msra.mxu0 0
        %356 = vmatprep.subr.bf16.mxu0 0
        %357 = vmatpush1.bf16.msra.mxu0 0
        %358 = vmatprep.subr.bf16.mxu0 0
        %359 = vmatpush1.bf16.msra.mxu0 0
        %360 = vmatprep.subr.bf16.mxu0 0
        %361 = vmatpush1.bf16.msra.mxu0 0
        %362 = vmatprep.subr.bf16.mxu0 0
        %363 = vmatpush1.bf16.msra.mxu0 0
        %364 = vmatprep.subr.bf16.mxu0 0
        %365 = vmatpush1.bf16.msra.mxu0 0
        %366 = vmatprep.subr.bf16.mxu0 0
        %367 = vmatpush1.bf16.msra.mxu0 0
        %368 = vmatprep.subr.bf16.mxu0 0
        %369 = vmatpush1.bf16.msra.mxu0 0
        %370 = vmatprep.subr.bf16.mxu0 0
        %371 = vmatpush1.bf16.msra.mxu0 0
        %372 = vmatprep.subr.bf16.mxu0 0
        %373 = vmatpush1.bf16.msra.mxu0 0
        %374 = vmatprep.subr.bf16.mxu0 0
        %375 = vmatpush1.bf16.msra.mxu0 0
        %376 = vmatprep.subr.bf16.mxu0 0
        %377 = vmatpush1.bf16.msra.mxu0 0
        %378 = vmatprep.subr.bf16.mxu0 0
        %379 = vmatpush1.bf16.msra.mxu0 0
        %380 = vmatprep.mubr.bf16.mxu0 0
        %381 = vmatmul.mubr.bf16.gmra.mrb[0].mxu0 %v300
        %v382 = vpop.f32.mrb[0].mxu0
        %v383 = vadd.f32 %v290, %v382
        %v384 = vpop.f32.mrb[0].mxu0
        %v385 = vpop.f32.mrb[0].mxu0
        %v386 = vpop.f32.mrb[0].mxu0
        %387 = vdwg.mxu0
        %v390 = vunpack.c.l.b16 %v250
        %v391 = vunpack.c.l.b16 %v251
        %v392 = vpack.c.b16 %v391, %v390
        %394 = vmatprep.subr.bf16.mxu0 0
        %395 = vmatpush1.bf16.msra.mxu0 %v392
        %396 = vmatprep.subr.bf16.mxu0 0
        %397 = vmatpush1.bf16.msra.mxu0 0
        %398 = vmatprep.subr.bf16.mxu0 0
        %399 = vmatpush1.bf16.msra.mxu0 0
        %400 = vmatprep.subr.bf16.mxu0 0
        %401 = vmatpush1.bf16.msra.mxu0 0
        %402 = vmatprep.subr.bf16.mxu0 0
        %403 = vmatpush1.bf16.msra.mxu0 0
        %404 = vmatprep.subr.bf16.mxu0 0
        %405 = vmatpush1.bf16.msra.mxu0 0
        %406 = vmatprep.subr.bf16.mxu0 0
        %407 = vmatpush1.bf16.msra.mxu0 0
        %408 = vmatprep.subr.bf16.mxu0 0
        %409 = vmatpush1.bf16.msra.mxu0 0
        %410 = vmatprep.subr.bf16.mxu0 0
        %411 = vmatpush1.bf16.msra.mxu0 0
        %412 = vmatprep.subr.bf16.mxu0 0
        %413 = vmatpush1.bf16.msra.mxu0 0
        %414 = vmatprep.subr.bf16.mxu0 0
        %415 = vmatpush1.bf16.msra.mxu0 0
        %416 = vmatprep.subr.bf16.mxu0 0
        %417 = vmatpush1.bf16.msra.mxu0 0
        %418 = vmatprep.subr.bf16.mxu0 0
        %419 = vmatpush1.bf16.msra.mxu0 0
        %420 = vmatprep.subr.bf16.mxu0 0
        %421 = vmatpush1.bf16.msra.mxu0 0
        %422 = vmatprep.subr.bf16.mxu0 0
        %423 = vmatpush1.bf16.msra.mxu0 0
        %424 = vmatprep.subr.bf16.mxu0 0
        %425 = vmatpush1.bf16.msra.mxu0 0
        %426 = vmatprep.mubr.bf16.mxu0 0
        %427 = vmatmul.mubr.bf16.gmra.mrb[0].mxu0 %v300
        %v428 = vpop.f32.mrb[0].mxu0
        %v429 = vadd.f32 %v290, %v428
        %v430 = vpop.f32.mrb[0].mxu0
        %v431 = vpop.f32.mrb[0].mxu0
        %v432 = vpop.f32.mrb[0].mxu0
        %433 = vdwg.mxu0
        %v436 = vunpack.c.l.b16 %v252
        %v437 = vunpack.c.l.b16 %v253
        %v438 = vpack.c.b16 %v437, %v436
        %440 = vmatprep.subr.bf16.mxu0 0
        %441 = vmatpush1.bf16.msra.mxu0 %v438
        %442 = vmatprep.subr.bf16.mxu0 0
        %443 = vmatpush1.bf16.msra.mxu0 0
        %444 = vmatprep.subr.bf16.mxu0 0
        %445 = vmatpush1.bf16.msra.mxu0 0
        %446 = vmatprep.subr.bf16.mxu0 0
        %447 = vmatpush1.bf16.msra.mxu0 0
        %448 = vmatprep.subr.bf16.mxu0 0
        %449 = vmatpush1.bf16.msra.mxu0 0
        %450 = vmatprep.subr.bf16.mxu0 0
        %451 = vmatpush1.bf16.msra.mxu0 0
        %452 = vmatprep.subr.bf16.mxu0 0
        %453 = vmatpush1.bf16.msra.mxu0 0
        %454 = vmatprep.subr.bf16.mxu0 0
        %455 = vmatpush1.bf16.msra.mxu0 0
        %456 = vmatprep.subr.bf16.mxu0 0
        %457 = vmatpush1.bf16.msra.mxu0 0
        %458 = vmatprep.subr.bf16.mxu0 0
        %459 = vmatpush1.bf16.msra.mxu0 0
        %460 = vmatprep.subr.bf16.mxu0 0
        %461 = vmatpush1.bf16.msra.mxu0 0
        %462 = vmatprep.subr.bf16.mxu0 0
        %463 = vmatpush1.bf16.msra.mxu0 0
        %464 = vmatprep.subr.bf16.mxu0 0
        %465 = vmatpush1.bf16.msra.mxu0 0
        %466 = vmatprep.subr.bf16.mxu0 0
        %467 = vmatpush1.bf16.msra.mxu0 0
        %468 = vmatprep.subr.bf16.mxu0 0
        %469 = vmatpush1.bf16.msra.mxu0 0
        %470 = vmatprep.subr.bf16.mxu0 0
        %471 = vmatpush1.bf16.msra.mxu0 0
        %472 = vmatprep.mubr.bf16.mxu0 0
        %473 = vmatmul.mubr.bf16.gmra.mrb[0].mxu0 %v300
        %v474 = vpop.f32.mrb[0].mxu0
        %v475 = vadd.f32 %v290, %v474
        %v476 = vpop.f32.mrb[0].mxu0
        %v477 = vpop.f32.mrb[0].mxu0
        %v478 = vpop.f32.mrb[0].mxu0
        %479 = vdwg.mxu0
        %v482 = vunpack.c.l.b16 %v254
        %v483 = vunpack.c.l.b16 %v255
        %v484 = vpack.c.b16 %v483, %v482
        %486 = vmatprep.subr.bf16.mxu0 0
        %487 = vmatpush1.bf16.msra.mxu0 %v484
        %488 = vmatprep.subr.bf16.mxu0 0
        %489 = vmatpush1.bf16.msra.mxu0 0
        %490 = vmatprep.subr.bf16.mxu0 0
        %491 = vmatpush1.bf16.msra.mxu0 0
        %492 = vmatprep.subr.bf16.mxu0 0
        %493 = vmatpush1.bf16.msra.mxu0 0
        %494 = vmatprep.subr.bf16.mxu0 0
        %495 = vmatpush1.bf16.msra.mxu0 0
        %496 = vmatprep.subr.bf16.mxu0 0
        %497 = vmatpush1.bf16.msra.mxu0 0
        %498 = vmatprep.subr.bf16.mxu0 0
        %499 = vmatpush1.bf16.msra.mxu0 0
        %500 = vmatprep.subr.bf16.mxu0 0
        %501 = vmatpush1.bf16.msra.mxu0 0
        %502 = vmatprep.subr.bf16.mxu0 0
        %503 = vmatpush1.bf16.msra.mxu0 0
        %504 = vmatprep.subr.bf16.mxu0 0
        %505 = vmatpush1.bf16.msra.mxu0 0
        %506 = vmatprep.subr.bf16.mxu0 0
        %507 = vmatpush1.bf16.msra.mxu0 0
        %508 = vmatprep.subr.bf16.mxu0 0
        %509 = vmatpush1.bf16.msra.mxu0 0
        %510 = vmatprep.subr.bf16.mxu0 0
        %511 = vmatpush1.bf16.msra.mxu0 0
        %512 = vmatprep.subr.bf16.mxu0 0
        %513 = vmatpush1.bf16.msra.mxu0 0
        %514 = vmatprep.subr.bf16.mxu0 0
        %515 = vmatpush1.bf16.msra.mxu0 0
        %516 = vmatprep.subr.bf16.mxu0 0
        %517 = vmatpush1.bf16.msra.mxu0 0
        %518 = vmatprep.mubr.bf16.mxu0 0
        %519 = vmatmul.mubr.bf16.gmra.mrb[0].mxu0 %v300
        %v520 = vpop.f32.mrb[0].mxu0
        %v521 = vadd.f32 %v290, %v520
        %v522 = vpop.f32.mrb[0].mxu0
        %v523 = vpop.f32.mrb[0].mxu0
        %v524 = vpop.f32.mrb[0].mxu0
        %525 = vdwg.mxu0
        %v528 = vunpack.c.l.b16 %v256
        %v529 = vunpack.c.l.b16 %v257
        %v530 = vpack.c.b16 %v529, %v528
        %532 = vmatprep.subr.bf16.mxu0 0
        %533 = vmatpush1.bf16.msra.mxu0 %v530
        %534 = vmatprep.subr.bf16.mxu0 0
        %535 = vmatpush1.bf16.msra.mxu0 0
        %536 = vmatprep.subr.bf16.mxu0 0
        %537 = vmatpush1.bf16.msra.mxu0 0
        %538 = vmatprep.subr.bf16.mxu0 0
        %539 = vmatpush1.bf16.msra.mxu0 0
        %540 = vmatprep.subr.bf16.mxu0 0
        %541 = vmatpush1.bf16.msra.mxu0 0
        %542 = vmatprep.subr.bf16.mxu0 0
        %543 = vmatpush1.bf16.msra.mxu0 0
        %544 = vmatprep.subr.bf16.mxu0 0
        %545 = vmatpush1.bf16.msra.mxu0 0
        %546 = vmatprep.subr.bf16.mxu0 0
        %547 = vmatpush1.bf16.msra.mxu0 0
        %548 = vmatprep.subr.bf16.mxu0 0
        %549 = vmatpush1.bf16.msra.mxu0 0
        %550 = vmatprep.subr.bf16.mxu0 0
        %551 = vmatpush1.bf16.msra.mxu0 0
        %552 = vmatprep.subr.bf16.mxu0 0
        %553 = vmatpush1.bf16.msra.mxu0 0
        %554 = vmatprep.subr.bf16.mxu0 0
        %555 = vmatpush1.bf16.msra.mxu0 0
        %556 = vmatprep.subr.bf16.mxu0 0
        %557 = vmatpush1.bf16.msra.mxu0 0
        %558 = vmatprep.subr.bf16.mxu0 0
        %559 = vmatpush1.bf16.msra.mxu0 0
        %560 = vmatprep.subr.bf16.mxu0 0
        %561 = vmatpush1.bf16.msra.mxu0 0
        %562 = vmatprep.subr.bf16.mxu0 0
        %563 = vmatpush1.bf16.msra.mxu0 0
        %564 = vmatprep.mubr.bf16.mxu0 0
        %565 = vmatmul.mubr.bf16.gmra.mrb[0].mxu0 %v300
        %v566 = vpop.f32.mrb[0].mxu0
        %v567 = vadd.f32 %v290, %v566
        %v568 = vpop.f32.mrb[0].mxu0
        %v569 = vpop.f32.mrb[0].mxu0
        %v570 = vpop.f32.mrb[0].mxu0
        %571 = vdwg.mxu0
        %v574 = vunpack.c.l.b16 %v258
        %v575 = vunpack.c.l.b16 %v259
        %v576 = vpack.c.b16 %v575, %v574
        %578 = vmatprep.subr.bf16.mxu0 0
        %579 = vmatpush1.bf16.msra.mxu0 %v576
        %580 = vmatprep.subr.bf16.mxu0 0
        %581 = vmatpush1.bf16.msra.mxu0 0
        %582 = vmatprep.subr.bf16.mxu0 0
        %583 = vmatpush1.bf16.msra.mxu0 0
        %584 = vmatprep.subr.bf16.mxu0 0
        %585 = vmatpush1.bf16.msra.mxu0 0
        %586 = vmatprep.subr.bf16.mxu0 0
        %587 = vmatpush1.bf16.msra.mxu0 0
        %588 = vmatprep.subr.bf16.mxu0 0
        %589 = vmatpush1.bf16.msra.mxu0 0
        %590 = vmatprep.subr.bf16.mxu0 0
        %591 = vmatpush1.bf16.msra.mxu0 0
        %592 = vmatprep.subr.bf16.mxu0 0
        %593 = vmatpush1.bf16.msra.mxu0 0
        %594 = vmatprep.subr.bf16.mxu0 0
        %595 = vmatpush1.bf16.msra.mxu0 0
        %596 = vmatprep.subr.bf16.mxu0 0
        %597 = vmatpush1.bf16.msra.mxu0 0
        %598 = vmatprep.subr.bf16.mxu0 0
        %599 = vmatpush1.bf16.msra.mxu0 0
        %600 = vmatprep.subr.bf16.mxu0 0
        %601 = vmatpush1.bf16.msra.mxu0 0
        %602 = vmatprep.subr.bf16.mxu0 0
        %603 = vmatpush1.bf16.msra.mxu0 0
        %604 = vmatprep.subr.bf16.mxu0 0
        %605 = vmatpush1.bf16.msra.mxu0 0
        %606 = vmatprep.subr.bf16.mxu0 0
        %607 = vmatpush1.bf16.msra.mxu0 0
        %608 = vmatprep.subr.bf16.mxu0 0
        %609 = vmatpush1.bf16.msra.mxu0 0
        %610 = vmatprep.mubr.bf16.mxu0 0
        %611 = vmatmul.mubr.bf16.gmra.mrb[0].mxu0 %v300
        %v612 = vpop.f32.mrb[0].mxu0
        %v613 = vadd.f32 %v290, %v612
        %v614 = vpop.f32.mrb[0].mxu0
        %v615 = vpop.f32.mrb[0].mxu0
        %v616 = vpop.f32.mrb[0].mxu0
        %617 = vdwg.mxu0
        %v620 = vunpack.c.l.b16 %v260
        %v621 = vunpack.c.l.b16 %v261
        %v622 = vpack.c.b16 %v621, %v620
        %624 = vmatprep.subr.bf16.mxu0 0
        %625 = vmatpush1.bf16.msra.mxu0 %v622
        %626 = vmatprep.subr.bf16.mxu0 0
        %627 = vmatpush1.bf16.msra.mxu0 0
        %628 = vmatprep.subr.bf16.mxu0 0
        %629 = vmatpush1.bf16.msra.mxu0 0
        %630 = vmatprep.subr.bf16.mxu0 0
        %631 = vmatpush1.bf16.msra.mxu0 0
        %632 = vmatprep.subr.bf16.mxu0 0
        %633 = vmatpush1.bf16.msra.mxu0 0
        %634 = vmatprep.subr.bf16.mxu0 0
        %635 = vmatpush1.bf16.msra.mxu0 0
        %636 = vmatprep.subr.bf16.mxu0 0
        %637 = vmatpush1.bf16.msra.mxu0 0
        %638 = vmatprep.subr.bf16.mxu0 0
        %639 = vmatpush1.bf16.msra.mxu0 0
        %640 = vmatprep.subr.bf16.mxu0 0
        %641 = vmatpush1.bf16.msra.mxu0 0
        %642 = vmatprep.subr.bf16.mxu0 0
        %643 = vmatpush1.bf16.msra.mxu0 0
        %644 = vmatprep.subr.bf16.mxu0 0
        %645 = vmatpush1.bf16.msra.mxu0 0
        %646 = vmatprep.subr.bf16.mxu0 0
        %647 = vmatpush1.bf16.msra.mxu0 0
        %648 = vmatprep.subr.bf16.mxu0 0
        %649 = vmatpush1.bf16.msra.mxu0 0
        %650 = vmatprep.subr.bf16.mxu0 0
        %651 = vmatpush1.bf16.msra.mxu0 0
        %652 = vmatprep.subr.bf16.mxu0 0
        %653 = vmatpush1.bf16.msra.mxu0 0
        %654 = vmatprep.subr.bf16.mxu0 0
        %655 = vmatpush1.bf16.msra.mxu0 0
        %656 = vmatprep.mubr.bf16.mxu0 0
        %657 = vmatmul.mubr.bf16.gmra.mrb[0].mxu0 %v300
        %v658 = vpop.f32.mrb[0].mxu0
        %v659 = vadd.f32 %v290, %v658
        %v660 = vpop.f32.mrb[0].mxu0
        %v661 = vpop.f32.mrb[0].mxu0
        %v662 = vpop.f32.mrb[0].mxu0
        %663 = vdwg.mxu0
        %v666 = vunpack.c.l.b16 %v262
        %v667 = vunpack.c.l.b16 %v263
        %v668 = vpack.c.b16 %v667, %v666
        %670 = vmatprep.subr.bf16.mxu0 0
        %671 = vmatpush1.bf16.msra.mxu0 %v668
        %672 = vmatprep.subr.bf16.mxu0 0
        %673 = vmatpush1.bf16.msra.mxu0 0
        %674 = vmatprep.subr.bf16.mxu0 0
        %675 = vmatpush1.bf16.msra.mxu0 0
        %676 = vmatprep.subr.bf16.mxu0 0
        %677 = vmatpush1.bf16.msra.mxu0 0
        %678 = vmatprep.subr.bf16.mxu0 0
        %679 = vmatpush1.bf16.msra.mxu0 0
        %680 = vmatprep.subr.bf16.mxu0 0
        %681 = vmatpush1.bf16.msra.mxu0 0
        %682 = vmatprep.subr.bf16.mxu0 0
        %683 = vmatpush1.bf16.msra.mxu0 0
        %684 = vmatprep.subr.bf16.mxu0 0
        %685 = vmatpush1.bf16.msra.mxu0 0
        %686 = vmatprep.subr.bf16.mxu0 0
        %687 = vmatpush1.bf16.msra.mxu0 0
        %688 = vmatprep.subr.bf16.mxu0 0
        %689 = vmatpush1.bf16.msra.mxu0 0
        %690 = vmatprep.subr.bf16.mxu0 0
        %691 = vmatpush1.bf16.msra.mxu0 0
        %692 = vmatprep.subr.bf16.mxu0 0
        %693 = vmatpush1.bf16.msra.mxu0 0
        %694 = vmatprep.subr.bf16.mxu0 0
        %695 = vmatpush1.bf16.msra.mxu0 0
        %696 = vmatprep.subr.bf16.mxu0 0
        %697 = vmatpush1.bf16.msra.mxu0 0
        %698 = vmatprep.subr.bf16.mxu0 0
        %699 = vmatpush1.bf16.msra.mxu0 0
        %700 = vmatprep.subr.bf16.mxu0 0
        %701 = vmatpush1.bf16.msra.mxu0 0
        %702 = vmatprep.mubr.bf16.mxu0 0
        %703 = vmatmul.mubr.bf16.gmra.mrb[0].mxu0 %v300
        %v704 = vpop.f32.mrb[0].mxu0
        %v705 = vadd.f32 %v290, %v704
        %v706 = vpop.f32.mrb[0].mxu0
        %v707 = vpop.f32.mrb[0].mxu0
        %v708 = vpop.f32.mrb[0].mxu0
        %709 = vdwg.mxu0
        %v712 = vunpack.c.l.b16 %v264
        %v713 = vunpack.c.l.b16 %v265
        %v714 = vpack.c.b16 %v713, %v712
        %716 = vmatprep.subr.bf16.mxu0 0
        %717 = vmatpush1.bf16.msra.mxu0 %v714
        %718 = vmatprep.subr.bf16.mxu0 0
        %719 = vmatpush1.bf16.msra.mxu0 0
        %720 = vmatprep.subr.bf16.mxu0 0
        %721 = vmatpush1.bf16.msra.mxu0 0
        %722 = vmatprep.subr.bf16.mxu0 0
        %723 = vmatpush1.bf16.msra.mxu0 0
        %724 = vmatprep.subr.bf16.mxu0 0
        %725 = vmatpush1.bf16.msra.mxu0 0
        %726 = vmatprep.subr.bf16.mxu0 0
        %727 = vmatpush1.bf16.msra.mxu0 0
        %728 = vmatprep.subr.bf16.mxu0 0
        %729 = vmatpush1.bf16.msra.mxu0 0
        %730 = vmatprep.subr.bf16.mxu0 0
        %731 = vmatpush1.bf16.msra.mxu0 0
        %732 = vmatprep.subr.bf16.mxu0 0
        %733 = vmatpush1.bf16.msra.mxu0 0
        %734 = vmatprep.subr.bf16.mxu0 0
        %735 = vmatpush1.bf16.msra.mxu0 0
        %736 = vmatprep.subr.bf16.mxu0 0
        %737 = vmatpush1.bf16.msra.mxu0 0
        %738 = vmatprep.subr.bf16.mxu0 0
        %739 = vmatpush1.bf16.msra.mxu0 0
        %740 = vmatprep.subr.bf16.mxu0 0
        %741 = vmatpush1.bf16.msra.mxu0 0
        %742 = vmatprep.subr.bf16.mxu0 0
        %743 = vmatpush1.bf16.msra.mxu0 0
        %744 = vmatprep.subr.bf16.mxu0 0
        %745 = vmatpush1.bf16.msra.mxu0 0
        %746 = vmatprep.subr.bf16.mxu0 0
        %747 = vmatpush1.bf16.msra.mxu0 0
        %748 = vmatprep.mubr.bf16.mxu0 0
        %749 = vmatmul.mubr.bf16.gmra.mrb[0].mxu0 %v300
        %v750 = vpop.f32.mrb[0].mxu0
        %v751 = vadd.f32 %v290, %v750
        %v752 = vpop.f32.mrb[0].mxu0
        %v753 = vpop.f32.mrb[0].mxu0
        %v754 = vpop.f32.mrb[0].mxu0
        %755 = vdwg.mxu0
        %v758 = vunpack.c.l.b16 %v266
        %v759 = vunpack.c.l.b16 %v267
        %v760 = vpack.c.b16 %v759, %v758
        %762 = vmatprep.subr.bf16.mxu0 0
        %763 = vmatpush1.bf16.msra.mxu0 %v760
        %764 = vmatprep.subr.bf16.mxu0 0
        %765 = vmatpush1.bf16.msra.mxu0 0
        %766 = vmatprep.subr.bf16.mxu0 0
        %767 = vmatpush1.bf16.msra.mxu0 0
        %768 = vmatprep.subr.bf16.mxu0 0
        %769 = vmatpush1.bf16.msra.mxu0 0
        %770 = vmatprep.subr.bf16.mxu0 0
        %771 = vmatpush1.bf16.msra.mxu0 0
        %772 = vmatprep.subr.bf16.mxu0 0
        %773 = vmatpush1.bf16.msra.mxu0 0
        %774 = vmatprep.subr.bf16.mxu0 0
        %775 = vmatpush1.bf16.msra.mxu0 0
        %776 = vmatprep.subr.bf16.mxu0 0
        %777 = vmatpush1.bf16.msra.mxu0 0
        %778 = vmatprep.subr.bf16.mxu0 0
        %779 = vmatpush1.bf16.msra.mxu0 0
        %780 = vmatprep.subr.bf16.mxu0 0
        %781 = vmatpush1.bf16.msra.mxu0 0
        %782 = vmatprep.subr.bf16.mxu0 0
        %783 = vmatpush1.bf16.msra.mxu0 0
        %784 = vmatprep.subr.bf16.mxu0 0
        %785 = vmatpush1.bf16.msra.mxu0 0
        %786 = vmatprep.subr.bf16.mxu0 0
        %787 = vmatpush1.bf16.msra.mxu0 0
        %788 = vmatprep.subr.bf16.mxu0 0
        %789 = vmatpush1.bf16.msra.mxu0 0
        %790 = vmatprep.subr.bf16.mxu0 0
        %791 = vmatpush1.bf16.msra.mxu0 0
        %792 = vmatprep.subr.bf16.mxu0 0
        %793 = vmatpush1.bf16.msra.mxu0 0
        %794 = vmatprep.mubr.bf16.mxu0 0
        %795 = vmatmul.mubr.bf16.gmra.mrb[0].mxu0 %v300
        %v796 = vpop.f32.mrb[0].mxu0
        %v797 = vadd.f32 %v290, %v796
        %v798 = vpop.f32.mrb[0].mxu0
        %v799 = vpop.f32.mrb[0].mxu0
        %v800 = vpop.f32.mrb[0].mxu0
        %801 = vdwg.mxu0
        %v804 = vunpack.c.l.b16 %v268
        %v805 = vunpack.c.l.b16 %v269
        %v806 = vpack.c.b16 %v805, %v804
        %808 = vmatprep.subr.bf16.mxu0 0
        %809 = vmatpush1.bf16.msra.mxu0 %v806
        %810 = vmatprep.subr.bf16.mxu0 0
        %811 = vmatpush1.bf16.msra.mxu0 0
        %812 = vmatprep.subr.bf16.mxu0 0
        %813 = vmatpush1.bf16.msra.mxu0 0
        %814 = vmatprep.subr.bf16.mxu0 0
        %815 = vmatpush1.bf16.msra.mxu0 0
        %816 = vmatprep.subr.bf16.mxu0 0
        %817 = vmatpush1.bf16.msra.mxu0 0
        %818 = vmatprep.subr.bf16.mxu0 0
        %819 = vmatpush1.bf16.msra.mxu0 0
        %820 = vmatprep.subr.bf16.mxu0 0
        %821 = vmatpush1.bf16.msra.mxu0 0
        %822 = vmatprep.subr.bf16.mxu0 0
        %823 = vmatpush1.bf16.msra.mxu0 0
        %824 = vmatprep.subr.bf16.mxu0 0
        %825 = vmatpush1.bf16.msra.mxu0 0
        %826 = vmatprep.subr.bf16.mxu0 0
        %827 = vmatpush1.bf16.msra.mxu0 0
        %828 = vmatprep.subr.bf16.mxu0 0
        %829 = vmatpush1.bf16.msra.mxu0 0
        %830 = vmatprep.subr.bf16.mxu0 0
        %831 = vmatpush1.bf16.msra.mxu0 0
        %832 = vmatprep.subr.bf16.mxu0 0
        %833 = vmatpush1.bf16.msra.mxu0 0
        %834 = vmatprep.subr.bf16.mxu0 0
        %835 = vmatpush1.bf16.msra.mxu0 0
        %836 = vmatprep.subr.bf16.mxu0 0
        %837 = vmatpush1.bf16.msra.mxu0 0
        %838 = vmatprep.subr.bf16.mxu0 0
        %839 = vmatpush1.bf16.msra.mxu0 0
        %840 = vmatprep.mubr.bf16.mxu0 0
        %841 = vmatmul.mubr.bf16.gmra.mrb[0].mxu0 %v300
        %v842 = vpop.f32.mrb[0].mxu0
        %v843 = vadd.f32 %v290, %v842
        %v844 = vpop.f32.mrb[0].mxu0
        %v845 = vpop.f32.mrb[0].mxu0
        %v846 = vpop.f32.mrb[0].mxu0
        %847 = vdwg.mxu0
        %v850 = vunpack.c.l.b16 %v270
        %v851 = vunpack.c.l.b16 %v271
        %v852 = vpack.c.b16 %v851, %v850
        %854 = vmatprep.subr.bf16.mxu0 0
        %855 = vmatpush1.bf16.msra.mxu0 %v852
        %856 = vmatprep.subr.bf16.mxu0 0
        %857 = vmatpush1.bf16.msra.mxu0 0
        %858 = vmatprep.subr.bf16.mxu0 0
        %859 = vmatpush1.bf16.msra.mxu0 0
        %860 = vmatprep.subr.bf16.mxu0 0
        %861 = vmatpush1.bf16.msra.mxu0 0
        %862 = vmatprep.subr.bf16.mxu0 0
        %863 = vmatpush1.bf16.msra.mxu0 0
        %864 = vmatprep.subr.bf16.mxu0 0
        %865 = vmatpush1.bf16.msra.mxu0 0
        %866 = vmatprep.subr.bf16.mxu0 0
        %867 = vmatpush1.bf16.msra.mxu0 0
        %868 = vmatprep.subr.bf16.mxu0 0
        %869 = vmatpush1.bf16.msra.mxu0 0
        %870 = vmatprep.subr.bf16.mxu0 0
        %871 = vmatpush1.bf16.msra.mxu0 0
        %872 = vmatprep.subr.bf16.mxu0 0
        %873 = vmatpush1.bf16.msra.mxu0 0
        %874 = vmatprep.subr.bf16.mxu0 0
        %875 = vmatpush1.bf16.msra.mxu0 0
        %876 = vmatprep.subr.bf16.mxu0 0
        %877 = vmatpush1.bf16.msra.mxu0 0
        %878 = vmatprep.subr.bf16.mxu0 0
        %879 = vmatpush1.bf16.msra.mxu0 0
        %880 = vmatprep.subr.bf16.mxu0 0
        %881 = vmatpush1.bf16.msra.mxu0 0
        %882 = vmatprep.subr.bf16.mxu0 0
        %883 = vmatpush1.bf16.msra.mxu0 0
        %884 = vmatprep.subr.bf16.mxu0 0
        %885 = vmatpush1.bf16.msra.mxu0 0
        %886 = vmatprep.mubr.bf16.mxu0 0
        %887 = vmatmul.mubr.bf16.gmra.mrb[0].mxu0 %v300
        %v888 = vpop.f32.mrb[0].mxu0
        %v889 = vadd.f32 %v290, %v888
        %v890 = vpop.f32.mrb[0].mxu0
        %v891 = vpop.f32.mrb[0].mxu0
        %v892 = vpop.f32.mrb[0].mxu0
        %893 = vdwg.mxu0
        %v896 = vunpack.c.l.b16 %v272
        %v897 = vunpack.c.l.b16 %v273
        %v898 = vpack.c.b16 %v897, %v896
        %900 = vmatprep.subr.bf16.mxu0 0
        %901 = vmatpush1.bf16.msra.mxu0 %v898
        %902 = vmatprep.subr.bf16.mxu0 0
        %903 = vmatpush1.bf16.msra.mxu0 0
        %904 = vmatprep.subr.bf16.mxu0 0
        %905 = vmatpush1.bf16.msra.mxu0 0
        %906 = vmatprep.subr.bf16.mxu0 0
        %907 = vmatpush1.bf16.msra.mxu0 0
        %908 = vmatprep.subr.bf16.mxu0 0
        %909 = vmatpush1.bf16.msra.mxu0 0
        %910 = vmatprep.subr.bf16.mxu0 0
        %911 = vmatpush1.bf16.msra.mxu0 0
        %912 = vmatprep.subr.bf16.mxu0 0
        %913 = vmatpush1.bf16.msra.mxu0 0
        %914 = vmatprep.subr.bf16.mxu0 0
        %915 = vmatpush1.bf16.msra.mxu0 0
        %916 = vmatprep.subr.bf16.mxu0 0
        %917 = vmatpush1.bf16.msra.mxu0 0
        %918 = vmatprep.subr.bf16.mxu0 0
        %919 = vmatpush1.bf16.msra.mxu0 0
        %920 = vmatprep.subr.bf16.mxu0 0
        %921 = vmatpush1.bf16.msra.mxu0 0
        %922 = vmatprep.subr.bf16.mxu0 0
        %923 = vmatpush1.bf16.msra.mxu0 0
        %924 = vmatprep.subr.bf16.mxu0 0
        %925 = vmatpush1.bf16.msra.mxu0 0
        %926 = vmatprep.subr.bf16.mxu0 0
        %927 = vmatpush1.bf16.msra.mxu0 0
        %928 = vmatprep.subr.bf16.mxu0 0
        %929 = vmatpush1.bf16.msra.mxu0 0
        %930 = vmatprep.subr.bf16.mxu0 0
        %931 = vmatpush1.bf16.msra.mxu0 0
        %932 = vmatprep.mubr.bf16.mxu0 0
        %933 = vmatmul.mubr.bf16.gmra.mrb[0].mxu0 %v300
        %v934 = vpop.f32.mrb[0].mxu0
        %v935 = vadd.f32 %v290, %v934
        %v936 = vpop.f32.mrb[0].mxu0
        %v937 = vpop.f32.mrb[0].mxu0
        %v938 = vpop.f32.mrb[0].mxu0
        %939 = vdwg.mxu0
        %v942 = vunpack.c.l.b16 %v274
        %v943 = vunpack.c.l.b16 %v275
        %v944 = vpack.c.b16 %v943, %v942
        %946 = vmatprep.subr.bf16.mxu0 0
        %947 = vmatpush1.bf16.msra.mxu0 %v944
        %948 = vmatprep.subr.bf16.mxu0 0
        %949 = vmatpush1.bf16.msra.mxu0 0
        %950 = vmatprep.subr.bf16.mxu0 0
        %951 = vmatpush1.bf16.msra.mxu0 0
        %952 = vmatprep.subr.bf16.mxu0 0
        %953 = vmatpush1.bf16.msra.mxu0 0
        %954 = vmatprep.subr.bf16.mxu0 0
        %955 = vmatpush1.bf16.msra.mxu0 0
        %956 = vmatprep.subr.bf16.mxu0 0
        %957 = vmatpush1.bf16.msra.mxu0 0
        %958 = vmatprep.subr.bf16.mxu0 0
        %959 = vmatpush1.bf16.msra.mxu0 0
        %960 = vmatprep.subr.bf16.mxu0 0
        %961 = vmatpush1.bf16.msra.mxu0 0
        %962 = vmatprep.subr.bf16.mxu0 0
        %963 = vmatpush1.bf16.msra.mxu0 0
        %964 = vmatprep.subr.bf16.mxu0 0
        %965 = vmatpush1.bf16.msra.mxu0 0
        %966 = vmatprep.subr.bf16.mxu0 0
        %967 = vmatpush1.bf16.msra.mxu0 0
        %968 = vmatprep.subr.bf16.mxu0 0
        %969 = vmatpush1.bf16.msra.mxu0 0
        %970 = vmatprep.subr.bf16.mxu0 0
        %971 = vmatpush1.bf16.msra.mxu0 0
        %972 = vmatprep.subr.bf16.mxu0 0
        %973 = vmatpush1.bf16.msra.mxu0 0
        %974 = vmatprep.subr.bf16.mxu0 0
        %975 = vmatpush1.bf16.msra.mxu0 0
        %976 = vmatprep.subr.bf16.mxu0 0
        %977 = vmatpush1.bf16.msra.mxu0 0
        %978 = vmatprep.mubr.bf16.mxu0 0
        %979 = vmatmul.mubr.bf16.gmra.mrb[0].mxu0 %v300
        %v980 = vpop.f32.mrb[0].mxu0
        %v981 = vadd.f32 %v290, %v980
        %v982 = vpop.f32.mrb[0].mxu0
        %v983 = vpop.f32.mrb[0].mxu0
        %v984 = vpop.f32.mrb[0].mxu0
        %985 = vdwg.mxu0
        %v988 = vunpack.c.l.b16 %v276
        %v989 = vunpack.c.l.b16 %v277
        %v990 = vpack.c.b16 %v989, %v988
        %992 = vmatprep.subr.bf16.mxu0 0
        %993 = vmatpush1.bf16.msra.mxu0 %v990
        %994 = vmatprep.subr.bf16.mxu0 0
        %995 = vmatpush1.bf16.msra.mxu0 0
        %996 = vmatprep.subr.bf16.mxu0 0
        %997 = vmatpush1.bf16.msra.mxu0 0
        %998 = vmatprep.subr.bf16.mxu0 0
        %999 = vmatpush1.bf16.msra.mxu0 0
        %1000 = vmatprep.subr.bf16.mxu0 0
        %1001 = vmatpush1.bf16.msra.mxu0 0
        %1002 = vmatprep.subr.bf16.mxu0 0
        %1003 = vmatpush1.bf16.msra.mxu0 0
        %1004 = vmatprep.subr.bf16.mxu0 0
        %1005 = vmatpush1.bf16.msra.mxu0 0
        %1006 = vmatprep.subr.bf16.mxu0 0
        %1007 = vmatpush1.bf16.msra.mxu0 0
        %1008 = vmatprep.subr.bf16.mxu0 0
        %1009 = vmatpush1.bf16.msra.mxu0 0
        %1010 = vmatprep.subr.bf16.mxu0 0
        %1011 = vmatpush1.bf16.msra.mxu0 0
        %1012 = vmatprep.subr.bf16.mxu0 0
        %1013 = vmatpush1.bf16.msra.mxu0 0
        %1014 = vmatprep.subr.bf16.mxu0 0
        %1015 = vmatpush1.bf16.msra.mxu0 0
        %1016 = vmatprep.subr.bf16.mxu0 0
        %1017 = vmatpush1.bf16.msra.mxu0 0
        %1018 = vmatprep.subr.bf16.mxu0 0
        %1019 = vmatpush1.bf16.msra.mxu0 0
        %1020 = vmatprep.subr.bf16.mxu0 0
        %1021 = vmatpush1.bf16.msra.mxu0 0
        %1022 = vmatprep.subr.bf16.mxu0 0
        %1023 = vmatpush1.bf16.msra.mxu0 0
        %1024 = vmatprep.mubr.bf16.mxu0 0
        %1025 = vmatmul.mubr.bf16.gmra.mrb[0].mxu0 %v300
        %v1026 = vpop.f32.mrb[0].mxu0
        %v1027 = vadd.f32 %v290, %v1026
        %v1028 = vpop.f32.mrb[0].mxu0
        %v1029 = vpop.f32.mrb[0].mxu0
        %v1030 = vpop.f32.mrb[0].mxu0
        %1031 = vdwg.mxu0
        %v1032 = vpack.c.bf16 %v337, %v337
        %v1033 = vpack.c.bf16 %v383, %v383
        %v1034 = vpack.c.bf16 %v429, %v429
        %v1035 = vpack.c.bf16 %v475, %v475
        %v1036 = vpack.c.bf16 %v521, %v521
        %v1037 = vpack.c.bf16 %v567, %v567
        %v1038 = vpack.c.bf16 %v613, %v613
        %v1039 = vpack.c.bf16 %v659, %v659
        %v1040 = vpack.c.bf16 %v705, %v705
        %v1041 = vpack.c.bf16 %v751, %v751
        %v1042 = vpack.c.bf16 %v797, %v797
        %v1043 = vpack.c.bf16 %v843, %v843
        %v1044 = vpack.c.bf16 %v889, %v889
        %v1045 = vpack.c.bf16 %v935, %v935
        %v1046 = vpack.c.bf16 %v981, %v981
        %v1047 = vpack.c.bf16 %v1027, %v1027
        %v1064 = vunpack.c.l.b16 %v1032
        %v1065 = vunpack.c.l.b16 %v1033
        %v1066 = vunpack.c.l.b16 %v1034
        %v1067 = vunpack.c.l.b16 %v1035
        %v1068 = vunpack.c.l.b16 %v1036
        %v1069 = vunpack.c.l.b16 %v1037
        %v1070 = vunpack.c.l.b16 %v1038
        %v1071 = vunpack.c.l.b16 %v1039
        %v1072 = vunpack.c.l.b16 %v1040
        %v1073 = vunpack.c.l.b16 %v1041
        %v1074 = vunpack.c.l.b16 %v1042
        %v1075 = vunpack.c.l.b16 %v1043
        %v1076 = vunpack.c.l.b16 %v1044
        %v1077 = vunpack.c.l.b16 %v1045
        %v1078 = vunpack.c.l.b16 %v1046
        %v1079 = vunpack.c.l.b16 %v1047
        %v1080 = vrot.slane %v1065, 7
        %vm1081 = vcmask 1041409
        %v1082 = vsel %vm1081, %v1080, %v1064
        %v1083 = vrot.slane %v1066, 6
        %vm1084 = vcmask 1042434
        %v1085 = vsel %vm1084, %v1083, %v1082
        %v1086 = vrot.slane %v1067, 5
        %vm1087 = vcmask 1043459
        %v1088 = vsel %vm1087, %v1086, %v1085
        %v1089 = vrot.slane %v1068, 4
        %vm1090 = vcmask 1044484
        %v1091 = vsel %vm1090, %v1089, %v1088
        %v1092 = vrot.slane %v1069, 3
        %vm1093 = vcmask 1045509
        %v1094 = vsel %vm1093, %v1092, %v1091
        %v1095 = vrot.slane %v1070, 2
        %vm1096 = vcmask 1046534
        %v1097 = vsel %vm1096, %v1095, %v1094
        %v1098 = vrot.slane %v1071, 1
        %vm1099 = vcmask 1047559
        %v1100 = vsel %vm1099, %v1098, %v1097
        %v1101 = vrot.slane %v1073, 7
        %v1102 = vsel %vm1081, %v1101, %v1072
        %v1103 = vrot.slane %v1074, 6
        %v1104 = vsel %vm1084, %v1103, %v1102
        %v1105 = vrot.slane %v1075, 5
        %v1106 = vsel %vm1087, %v1105, %v1104
        %v1107 = vrot.slane %v1076, 4
        %v1108 = vsel %vm1090, %v1107, %v1106
        %v1109 = vrot.slane %v1077, 3
        %v1110 = vsel %vm1093, %v1109, %v1108
        %v1111 = vrot.slane %v1078, 2
        %v1112 = vsel %vm1096, %v1111, %v1110
        %v1113 = vrot.slane %v1079, 1
        %v1114 = vsel %vm1099, %v1113, %v1112
        %v1115 = vpack.c.b16 %v1114, %v1100
        %v1118 = vunpack.c.l.b16 %v284
        %v1119 = vunpack.c.l.b16 %v285
        %v1120 = vpack.c.b16 %v1119, %v1118
        %v1123 = vsel %vm298, %v1115, 0
        %1125 = vmatprep.subr.bf16.mxu0 0
        %1126 = vmatpush1.bf16.msra.mxu0 %v1120
        %1127 = vmatprep.subr.bf16.mxu0 0
        %1128 = vmatpush1.bf16.msra.mxu0 0
        %1129 = vmatprep.subr.bf16.mxu0 0
        %1130 = vmatpush1.bf16.msra.mxu0 0
        %1131 = vmatprep.subr.bf16.mxu0 0
        %1132 = vmatpush1.bf16.msra.mxu0 0
        %1133 = vmatprep.subr.bf16.mxu0 0
        %1134 = vmatpush1.bf16.msra.mxu0 0
        %1135 = vmatprep.subr.bf16.mxu0 0
        %1136 = vmatpush1.bf16.msra.mxu0 0
        %1137 = vmatprep.subr.bf16.mxu0 0
        %1138 = vmatpush1.bf16.msra.mxu0 0
        %1139 = vmatprep.subr.bf16.mxu0 0
        %1140 = vmatpush1.bf16.msra.mxu0 0
        %1141 = vmatprep.subr.bf16.mxu0 0
        %1142 = vmatpush1.bf16.msra.mxu0 0
        %1143 = vmatprep.subr.bf16.mxu0 0
        %1144 = vmatpush1.bf16.msra.mxu0 0
        %1145 = vmatprep.subr.bf16.mxu0 0
        %1146 = vmatpush1.bf16.msra.mxu0 0
        %1147 = vmatprep.subr.bf16.mxu0 0
        %1148 = vmatpush1.bf16.msra.mxu0 0
        %1149 = vmatprep.subr.bf16.mxu0 0
        %1150 = vmatpush1.bf16.msra.mxu0 0
        %1151 = vmatprep.subr.bf16.mxu0 0
        %1152 = vmatpush1.bf16.msra.mxu0 0
        %1153 = vmatprep.subr.bf16.mxu0 0
        %1154 = vmatpush1.bf16.msra.mxu0 0
        %1155 = vmatprep.subr.bf16.mxu0 0
        %1156 = vmatpush1.bf16.msra.mxu0 0
        %1157 = vmatprep.mubr.bf16.mxu0 0
        %1158 = vmatmul.mubr.bf16.gmra.mrb[0].mxu0 %v1123
        %v1159 = vpop.f32.mrb[0].mxu0
        %v1160 = vadd.f32 0.0, %v1159
        %v1161 = vpop.f32.mrb[0].mxu0
        %v1162 = vpop.f32.mrb[0].mxu0
        %v1163 = vadd.f32 0.0, %v1162
        %v1164 = vpop.f32.mrb[0].mxu0
        %1165 = vdwg.mxu0
        %v1166 = vpack.c.bf16 %v1163, %v1160
        %v1172 = vunpack.c.l.b16 %v279
        %v1173 = vunpack.c.l.b16 %v280
        %v1174 = vunpack.c.l.b16 %v281
        %v1175 = vunpack.c.l.b16 %v282
        %v1176 = vunpack.c.l.b16 %v283
        %v1177 = vpack.c.b16 %v1173, %v1172
        %v1178 = vpack.c.b16 %v1175, %v1174
        %v1179 = vpack.c.b16 %v1176, %v1176
        %v1181 = vsel %vm298, %v1177, 0
        %v1184 = vsel %vm298, %v1178, 0
        %v1187 = vsel %vm298, %v1179, 0
        %1189 = vmatprep.subr.bf16.mxu0 0
        %1190 = vmatpush1.bf16.msra.mxu0 %v1166
        %1191 = vmatprep.subr.bf16.mxu0 0
        %1192 = vmatpush1.bf16.msra.mxu0 0
        %1193 = vmatprep.subr.bf16.mxu0 0
        %1194 = vmatpush1.bf16.msra.mxu0 0
        %1195 = vmatprep.subr.bf16.mxu0 0
        %1196 = vmatpush1.bf16.msra.mxu0 0
        %1197 = vmatprep.subr.bf16.mxu0 0
        %1198 = vmatpush1.bf16.msra.mxu0 0
        %1199 = vmatprep.subr.bf16.mxu0 0
        %1200 = vmatpush1.bf16.msra.mxu0 0
        %1201 = vmatprep.subr.bf16.mxu0 0
        %1202 = vmatpush1.bf16.msra.mxu0 0
        %1203 = vmatprep.subr.bf16.mxu0 0
        %1204 = vmatpush1.bf16.msra.mxu0 0
        %1205 = vmatprep.subr.bf16.mxu0 0
        %1206 = vmatpush1.bf16.msra.mxu0 0
        %1207 = vmatprep.subr.bf16.mxu0 0
        %1208 = vmatpush1.bf16.msra.mxu0 0
        %1209 = vmatprep.subr.bf16.mxu0 0
        %1210 = vmatpush1.bf16.msra.mxu0 0
        %1211 = vmatprep.subr.bf16.mxu0 0
        %1212 = vmatpush1.bf16.msra.mxu0 0
        %1213 = vmatprep.subr.bf16.mxu0 0
        %1214 = vmatpush1.bf16.msra.mxu0 0
        %1215 = vmatprep.subr.bf16.mxu0 0
        %1216 = vmatpush1.bf16.msra.mxu0 0
        %1217 = vmatprep.subr.bf16.mxu0 0
        %1218 = vmatpush1.bf16.msra.mxu0 0
        %1219 = vmatprep.subr.bf16.mxu0 0
        %1220 = vmatpush1.bf16.msra.mxu0 0
        %1221 = vmatprep.mubr.bf16.mxu0 0
        %1222 = vmatmul.mubr.bf16.gmra.mrb[0].mxu0 %v1181
        %v1223 = vpop.f32.mrb[0].mxu0
        %v1224 = vadd.f32 0.0, %v1223
        %v1225 = vpop.f32.mrb[0].mxu0
        %v1226 = vpop.f32.mrb[0].mxu0
        %v1227 = vadd.f32 0.0, %v1226
        %v1228 = vpop.f32.mrb[0].mxu0
        %1229 = vmatprep.mubr.bf16.mxu0 0
        %1230 = vmatmul.mubr.bf16.gmra.mrb[0].mxu0 %v1184
        %v1231 = vpop.f32.mrb[0].mxu0
        %v1232 = vadd.f32 0.0, %v1231
        %v1233 = vpop.f32.mrb[0].mxu0
        %v1234 = vpop.f32.mrb[0].mxu0
        %v1235 = vadd.f32 0.0, %v1234
        %v1236 = vpop.f32.mrb[0].mxu0
        %1237 = vmatprep.mubr.bf16.mxu0 0
        %1238 = vmatmul.mubr.bf16.gmra.mrb[0].mxu0 %v1187
        %v1239 = vpop.f32.mrb[0].mxu0
        %v1240 = vadd.f32 0.0, %v1239
        %v1241 = vpop.f32.mrb[0].mxu0
        %v1242 = vpop.f32.mrb[0].mxu0
        %v1243 = vpop.f32.mrb[0].mxu0
        %1244 = vdwg.mxu0
        %vm1245 = vcmask 334848
        %1246 = vst.msk [vmem:[%s244] sm:$0xff] %vm1245, %v1224
        %1247 = vst.msk [vmem:[%s244 + $0x8] sm:$0xff] %vm1245, %v1227
        %1248 = vst.msk [vmem:[%s244 + $0x10] sm:$0xff] %vm1245, %v1232
        %1249 = vst.msk [vmem:[%s244 + $0x18] sm:$0xff] %vm1245, %v1235
        %vm1250 = vcmask 331776
        %1251 = vst.msk [vmem:[%s244 + $0x20] sm:$0x1f] %vm1250, %v1240
        %v1252 = vrot.slane %v1064, 1
        %v1253 = vsel %vm1081, %v1065, %v1252
        %v1254 = vrot.slane %v1066, 7
        %v1255 = vsel %vm1084, %v1254, %v1253
        %v1256 = vrot.slane %v1067, 6
        %v1257 = vsel %vm1087, %v1256, %v1255
        %v1258 = vrot.slane %v1068, 5
        %v1259 = vsel %vm1090, %v1258, %v1257
        %v1260 = vrot.slane %v1069, 4
        %v1261 = vsel %vm1093, %v1260, %v1259
        %v1262 = vrot.slane %v1070, 3
        %v1263 = vsel %vm1096, %v1262, %v1261
        %v1264 = vrot.slane %v1071, 2
        %v1265 = vsel %vm1099, %v1264, %v1263
        %v1266 = vrot.slane %v1072, 1
        %v1267 = vsel %vm1081, %v1073, %v1266
        %v1268 = vrot.slane %v1074, 7
        %v1269 = vsel %vm1084, %v1268, %v1267
        %v1270 = vrot.slane %v1075, 6
        %v1271 = vsel %vm1087, %v1270, %v1269
        %v1272 = vrot.slane %v1076, 5
        %v1273 = vsel %vm1090, %v1272, %v1271
        %v1274 = vrot.slane %v1077, 4
        %v1275 = vsel %vm1093, %v1274, %v1273
        %v1276 = vrot.slane %v1078, 3
        %v1277 = vsel %vm1096, %v1276, %v1275
        %v1278 = vrot.slane %v1079, 2
        %v1279 = vsel %vm1099, %v1278, %v1277
        %v1280 = vpack.c.b16 %v1279, %v1265
        %v1282 = vsel %vm298, %v1280, 0
        %1284 = vmatprep.subr.bf16.mxu0 0
        %1285 = vmatpush1.bf16.msra.mxu0 %v1120
        %1286 = vmatprep.subr.bf16.mxu0 0
        %1287 = vmatpush1.bf16.msra.mxu0 0
        %1288 = vmatprep.subr.bf16.mxu0 0
        %1289 = vmatpush1.bf16.msra.mxu0 0
        %1290 = vmatprep.subr.bf16.mxu0 0
        %1291 = vmatpush1.bf16.msra.mxu0 0
        %1292 = vmatprep.subr.bf16.mxu0 0
        %1293 = vmatpush1.bf16.msra.mxu0 0
        %1294 = vmatprep.subr.bf16.mxu0 0
        %1295 = vmatpush1.bf16.msra.mxu0 0
        %1296 = vmatprep.subr.bf16.mxu0 0
        %1297 = vmatpush1.bf16.msra.mxu0 0
        %1298 = vmatprep.subr.bf16.mxu0 0
        %1299 = vmatpush1.bf16.msra.mxu0 0
        %1300 = vmatprep.subr.bf16.mxu0 0
        %1301 = vmatpush1.bf16.msra.mxu0 0
        %1302 = vmatprep.subr.bf16.mxu0 0
        %1303 = vmatpush1.bf16.msra.mxu0 0
        %1304 = vmatprep.subr.bf16.mxu0 0
        %1305 = vmatpush1.bf16.msra.mxu0 0
        %1306 = vmatprep.subr.bf16.mxu0 0
        %1307 = vmatpush1.bf16.msra.mxu0 0
        %1308 = vmatprep.subr.bf16.mxu0 0
        %1309 = vmatpush1.bf16.msra.mxu0 0
        %1310 = vmatprep.subr.bf16.mxu0 0
        %1311 = vmatpush1.bf16.msra.mxu0 0
        %1312 = vmatprep.subr.bf16.mxu0 0
        %1313 = vmatpush1.bf16.msra.mxu0 0
        %1314 = vmatprep.subr.bf16.mxu0 0
        %1315 = vmatpush1.bf16.msra.mxu0 0
        %1316 = vmatprep.mubr.bf16.mxu0 0
        %1317 = vmatmul.mubr.bf16.gmra.mrb[0].mxu0 %v1282
        %v1318 = vpop.f32.mrb[0].mxu0
        %v1319 = vadd.f32 0.0, %v1318
        %v1320 = vpop.f32.mrb[0].mxu0
        %v1321 = vpop.f32.mrb[0].mxu0
        %v1322 = vadd.f32 0.0, %v1321
        %v1323 = vpop.f32.mrb[0].mxu0
        %1324 = vdwg.mxu0
        %v1325 = vpack.c.bf16 %v1322, %v1319
        %1326 = vmatprep.subr.bf16.mxu0 0
        %1327 = vmatpush1.bf16.msra.mxu0 %v1325
        %1328 = vmatprep.subr.bf16.mxu0 0
        %1329 = vmatpush1.bf16.msra.mxu0 0
        %1330 = vmatprep.subr.bf16.mxu0 0
        %1331 = vmatpush1.bf16.msra.mxu0 0
        %1332 = vmatprep.subr.bf16.mxu0 0
        %1333 = vmatpush1.bf16.msra.mxu0 0
        %1334 = vmatprep.subr.bf16.mxu0 0
        %1335 = vmatpush1.bf16.msra.mxu0 0
        %1336 = vmatprep.subr.bf16.mxu0 0
        %1337 = vmatpush1.bf16.msra.mxu0 0
        %1338 = vmatprep.subr.bf16.mxu0 0
        %1339 = vmatpush1.bf16.msra.mxu0 0
        %1340 = vmatprep.subr.bf16.mxu0 0
        %1341 = vmatpush1.bf16.msra.mxu0 0
        %1342 = vmatprep.subr.bf16.mxu0 0
        %1343 = vmatpush1.bf16.msra.mxu0 0
        %1344 = vmatprep.subr.bf16.mxu0 0
        %1345 = vmatpush1.bf16.msra.mxu0 0
        %1346 = vmatprep.subr.bf16.mxu0 0
        %1347 = vmatpush1.bf16.msra.mxu0 0
        %1348 = vmatprep.subr.bf16.mxu0 0
        %1349 = vmatpush1.bf16.msra.mxu0 0
        %1350 = vmatprep.subr.bf16.mxu0 0
        %1351 = vmatpush1.bf16.msra.mxu0 0
        %1352 = vmatprep.subr.bf16.mxu0 0
        %1353 = vmatpush1.bf16.msra.mxu0 0
        %1354 = vmatprep.subr.bf16.mxu0 0
        %1355 = vmatpush1.bf16.msra.mxu0 0
        %1356 = vmatprep.subr.bf16.mxu0 0
        %1357 = vmatpush1.bf16.msra.mxu0 0
        %1358 = vmatprep.mubr.bf16.mxu0 0
        %1359 = vmatmul.mubr.bf16.gmra.mrb[0].mxu0 %v1181
        %v1360 = vpop.f32.mrb[0].mxu0
        %v1361 = vadd.f32 0.0, %v1360
        %v1362 = vpop.f32.mrb[0].mxu0
        %v1363 = vpop.f32.mrb[0].mxu0
        %v1364 = vadd.f32 0.0, %v1363
        %v1365 = vpop.f32.mrb[0].mxu0
        %1366 = vmatprep.mubr.bf16.mxu0 0
        %1367 = vmatmul.mubr.bf16.gmra.mrb[0].mxu0 %v1184
        %v1368 = vpop.f32.mrb[0].mxu0
        %v1369 = vadd.f32 0.0, %v1368
        %v1370 = vpop.f32.mrb[0].mxu0
        %v1371 = vpop.f32.mrb[0].mxu0
        %v1372 = vadd.f32 0.0, %v1371
        %v1373 = vpop.f32.mrb[0].mxu0
        %1374 = vmatprep.mubr.bf16.mxu0 0
        %1375 = vmatmul.mubr.bf16.gmra.mrb[0].mxu0 %v1187
        %v1376 = vpop.f32.mrb[0].mxu0
        %v1377 = vadd.f32 0.0, %v1376
        %v1378 = vpop.f32.mrb[0].mxu0
        %v1379 = vpop.f32.mrb[0].mxu0
        %v1380 = vpop.f32.mrb[0].mxu0
        %1381 = vdwg.mxu0
        %s1382 = scalar_lea.vmem %s244, 40
        %1383 = vst.msk [vmem:[%s1382] sm:$0xff] %vm1245, %v1361
        %1384 = vst.msk [vmem:[%s1382 + $0x8] sm:$0xff] %vm1245, %v1364
        %1385 = vst.msk [vmem:[%s1382 + $0x10] sm:$0xff] %vm1245, %v1369
        %1386 = vst.msk [vmem:[%s1382 + $0x18] sm:$0xff] %vm1245, %v1372
        %1387 = vst.msk [vmem:[%s1382 + $0x20] sm:$0x1f] %vm1250, %v1377
        %v1388 = vrot.slane %v1064, 2
        %v1389 = vrot.slane %v1065, 1
        %v1390 = vsel %vm1081, %v1389, %v1388
        %v1391 = vsel %vm1084, %v1066, %v1390
        %v1392 = vrot.slane %v1067, 7
        %v1393 = vsel %vm1087, %v1392, %v1391
        %v1394 = vrot.slane %v1068, 6
        %v1395 = vsel %vm1090, %v1394, %v1393
        %v1396 = vrot.slane %v1069, 5
        %v1397 = vsel %vm1093, %v1396, %v1395
        %v1398 = vrot.slane %v1070, 4
        %v1399 = vsel %vm1096, %v1398, %v1397
        %v1400 = vrot.slane %v1071, 3
        %v1401 = vsel %vm1099, %v1400, %v1399
        %v1402 = vrot.slane %v1072, 2
        %v1403 = vrot.slane %v1073, 1
        %v1404 = vsel %vm1081, %v1403, %v1402
        %v1405 = vsel %vm1084, %v1074, %v1404
        %v1406 = vrot.slane %v1075, 7
        %v1407 = vsel %vm1087, %v1406, %v1405
        %v1408 = vrot.slane %v1076, 6
        %v1409 = vsel %vm1090, %v1408, %v1407
        %v1410 = vrot.slane %v1077, 5
        %v1411 = vsel %vm1093, %v1410, %v1409
        %v1412 = vrot.slane %v1078, 4
        %v1413 = vsel %vm1096, %v1412, %v1411
        %v1414 = vrot.slane %v1079, 3
        %v1415 = vsel %vm1099, %v1414, %v1413
        %v1416 = vpack.c.b16 %v1415, %v1401
        %v1418 = vsel %vm298, %v1416, 0
        %1420 = vmatprep.subr.bf16.mxu0 0
        %1421 = vmatpush1.bf16.msra.mxu0 %v1120
        %1422 = vmatprep.subr.bf16.mxu0 0
        %1423 = vmatpush1.bf16.msra.mxu0 0
        %1424 = vmatprep.subr.bf16.mxu0 0
        %1425 = vmatpush1.bf16.msra.mxu0 0
        %1426 = vmatprep.subr.bf16.mxu0 0
        %1427 = vmatpush1.bf16.msra.mxu0 0
        %1428 = vmatprep.subr.bf16.mxu0 0
        %1429 = vmatpush1.bf16.msra.mxu0 0
        %1430 = vmatprep.subr.bf16.mxu0 0
        %1431 = vmatpush1.bf16.msra.mxu0 0
        %1432 = vmatprep.subr.bf16.mxu0 0
        %1433 = vmatpush1.bf16.msra.mxu0 0
        %1434 = vmatprep.subr.bf16.mxu0 0
        %1435 = vmatpush1.bf16.msra.mxu0 0
        %1436 = vmatprep.subr.bf16.mxu0 0
        %1437 = vmatpush1.bf16.msra.mxu0 0
        %1438 = vmatprep.subr.bf16.mxu0 0
        %1439 = vmatpush1.bf16.msra.mxu0 0
        %1440 = vmatprep.subr.bf16.mxu0 0
        %1441 = vmatpush1.bf16.msra.mxu0 0
        %1442 = vmatprep.subr.bf16.mxu0 0
        %1443 = vmatpush1.bf16.msra.mxu0 0
        %1444 = vmatprep.subr.bf16.mxu0 0
        %1445 = vmatpush1.bf16.msra.mxu0 0
        %1446 = vmatprep.subr.bf16.mxu0 0
        %1447 = vmatpush1.bf16.msra.mxu0 0
        %1448 = vmatprep.subr.bf16.mxu0 0
        %1449 = vmatpush1.bf16.msra.mxu0 0
        %1450 = vmatprep.subr.bf16.mxu0 0
        %1451 = vmatpush1.bf16.msra.mxu0 0
        %1452 = vmatprep.mubr.bf16.mxu0 0
        %1453 = vmatmul.mubr.bf16.gmra.mrb[0].mxu0 %v1418
        %v1454 = vpop.f32.mrb[0].mxu0
        %v1455 = vadd.f32 0.0, %v1454
        %v1456 = vpop.f32.mrb[0].mxu0
        %v1457 = vpop.f32.mrb[0].mxu0
        %v1458 = vadd.f32 0.0, %v1457
        %v1459 = vpop.f32.mrb[0].mxu0
        %1460 = vdwg.mxu0
        %v1461 = vpack.c.bf16 %v1458, %v1455
        %1462 = vmatprep.subr.bf16.mxu0 0
        %1463 = vmatpush1.bf16.msra.mxu0 %v1461
        %1464 = vmatprep.subr.bf16.mxu0 0
        %1465 = vmatpush1.bf16.msra.mxu0 0
        %1466 = vmatprep.subr.bf16.mxu0 0
        %1467 = vmatpush1.bf16.msra.mxu0 0
        %1468 = vmatprep.subr.bf16.mxu0 0
        %1469 = vmatpush1.bf16.msra.mxu0 0
        %1470 = vmatprep.subr.bf16.mxu0 0
        %1471 = vmatpush1.bf16.msra.mxu0 0
        %1472 = vmatprep.subr.bf16.mxu0 0
        %1473 = vmatpush1.bf16.msra.mxu0 0
        %1474 = vmatprep.subr.bf16.mxu0 0
        %1475 = vmatpush1.bf16.msra.mxu0 0
        %1476 = vmatprep.subr.bf16.mxu0 0
        %1477 = vmatpush1.bf16.msra.mxu0 0
        %1478 = vmatprep.subr.bf16.mxu0 0
        %1479 = vmatpush1.bf16.msra.mxu0 0
        %1480 = vmatprep.subr.bf16.mxu0 0
        %1481 = vmatpush1.bf16.msra.mxu0 0
        %1482 = vmatprep.subr.bf16.mxu0 0
        %1483 = vmatpush1.bf16.msra.mxu0 0
        %1484 = vmatprep.subr.bf16.mxu0 0
        %1485 = vmatpush1.bf16.msra.mxu0 0
        %1486 = vmatprep.subr.bf16.mxu0 0
        %1487 = vmatpush1.bf16.msra.mxu0 0
        %1488 = vmatprep.subr.bf16.mxu0 0
        %1489 = vmatpush1.bf16.msra.mxu0 0
        %1490 = vmatprep.subr.bf16.mxu0 0
        %1491 = vmatpush1.bf16.msra.mxu0 0
        %1492 = vmatprep.subr.bf16.mxu0 0
        %1493 = vmatpush1.bf16.msra.mxu0 0
        %1494 = vmatprep.mubr.bf16.mxu0 0
        %1495 = vmatmul.mubr.bf16.gmra.mrb[0].mxu0 %v1181
        %v1496 = vpop.f32.mrb[0].mxu0
        %v1497 = vadd.f32 0.0, %v1496
        %v1498 = vpop.f32.mrb[0].mxu0
        %v1499 = vpop.f32.mrb[0].mxu0
        %v1500 = vadd.f32 0.0, %v1499
        %v1501 = vpop.f32.mrb[0].mxu0
        %1502 = vmatprep.mubr.bf16.mxu0 0
        %1503 = vmatmul.mubr.bf16.gmra.mrb[0].mxu0 %v1184
        %v1504 = vpop.f32.mrb[0].mxu0
        %v1505 = vadd.f32 0.0, %v1504
        %v1506 = vpop.f32.mrb[0].mxu0
        %v1507 = vpop.f32.mrb[0].mxu0
        %v1508 = vadd.f32 0.0, %v1507
        %v1509 = vpop.f32.mrb[0].mxu0
        %1510 = vmatprep.mubr.bf16.mxu0 0
        %1511 = vmatmul.mubr.bf16.gmra.mrb[0].mxu0 %v1187
        %v1512 = vpop.f32.mrb[0].mxu0
        %v1513 = vadd.f32 0.0, %v1512
        %v1514 = vpop.f32.mrb[0].mxu0
        %v1515 = vpop.f32.mrb[0].mxu0
        %v1516 = vpop.f32.mrb[0].mxu0
        %1517 = vdwg.mxu0
        %s1518 = scalar_lea.vmem %s244, 80
        %1519 = vst.msk [vmem:[%s1518] sm:$0xff] %vm1245, %v1497
        %1520 = vst.msk [vmem:[%s1518 + $0x8] sm:$0xff] %vm1245, %v1500
        %1521 = vst.msk [vmem:[%s1518 + $0x10] sm:$0xff] %vm1245, %v1505
        %1522 = vst.msk [vmem:[%s1518 + $0x18] sm:$0xff] %vm1245, %v1508
        %1523 = vst.msk [vmem:[%s1518 + $0x20] sm:$0x1f] %vm1250, %v1513
        %v1524 = vrot.slane %v1064, 3
        %v1525 = vrot.slane %v1065, 2
        %v1526 = vsel %vm1081, %v1525, %v1524
        %v1527 = vrot.slane %v1066, 1
        %v1528 = vsel %vm1084, %v1527, %v1526
        %v1529 = vsel %vm1087, %v1067, %v1528
        %v1530 = vrot.slane %v1068, 7
        %v1531 = vsel %vm1090, %v1530, %v1529
        %v1532 = vrot.slane %v1069, 6
        %v1533 = vsel %vm1093, %v1532, %v1531
        %v1534 = vrot.slane %v1070, 5
        %v1535 = vsel %vm1096, %v1534, %v1533
        %v1536 = vrot.slane %v1071, 4
        %v1537 = vsel %vm1099, %v1536, %v1535
        %v1538 = vrot.slane %v1072, 3
        %v1539 = vrot.slane %v1073, 2
        %v1540 = vsel %vm1081, %v1539, %v1538
        %v1541 = vrot.slane %v1074, 1
        %v1542 = vsel %vm1084, %v1541, %v1540
        %v1543 = vsel %vm1087, %v1075, %v1542
        %v1544 = vrot.slane %v1076, 7
        %v1545 = vsel %vm1090, %v1544, %v1543
        %v1546 = vrot.slane %v1077, 6
        %v1547 = vsel %vm1093, %v1546, %v1545
        %v1548 = vrot.slane %v1078, 5
        %v1549 = vsel %vm1096, %v1548, %v1547
        %v1550 = vrot.slane %v1079, 4
        %v1551 = vsel %vm1099, %v1550, %v1549
        %v1552 = vpack.c.b16 %v1551, %v1537
        %v1554 = vsel %vm298, %v1552, 0
        %1556 = vmatprep.subr.bf16.mxu0 0
        %1557 = vmatpush1.bf16.msra.mxu0 %v1120
        %1558 = vmatprep.subr.bf16.mxu0 0
        %1559 = vmatpush1.bf16.msra.mxu0 0
        %1560 = vmatprep.subr.bf16.mxu0 0
        %1561 = vmatpush1.bf16.msra.mxu0 0
        %1562 = vmatprep.subr.bf16.mxu0 0
        %1563 = vmatpush1.bf16.msra.mxu0 0
        %1564 = vmatprep.subr.bf16.mxu0 0
        %1565 = vmatpush1.bf16.msra.mxu0 0
        %1566 = vmatprep.subr.bf16.mxu0 0
        %1567 = vmatpush1.bf16.msra.mxu0 0
        %1568 = vmatprep.subr.bf16.mxu0 0
        %1569 = vmatpush1.bf16.msra.mxu0 0
        %1570 = vmatprep.subr.bf16.mxu0 0
        %1571 = vmatpush1.bf16.msra.mxu0 0
        %1572 = vmatprep.subr.bf16.mxu0 0
        %1573 = vmatpush1.bf16.msra.mxu0 0
        %1574 = vmatprep.subr.bf16.mxu0 0
        %1575 = vmatpush1.bf16.msra.mxu0 0
        %1576 = vmatprep.subr.bf16.mxu0 0
        %1577 = vmatpush1.bf16.msra.mxu0 0
        %1578 = vmatprep.subr.bf16.mxu0 0
        %1579 = vmatpush1.bf16.msra.mxu0 0
        %1580 = vmatprep.subr.bf16.mxu0 0
        %1581 = vmatpush1.bf16.msra.mxu0 0
        %1582 = vmatprep.subr.bf16.mxu0 0
        %1583 = vmatpush1.bf16.msra.mxu0 0
        %1584 = vmatprep.subr.bf16.mxu0 0
        %1585 = vmatpush1.bf16.msra.mxu0 0
        %1586 = vmatprep.subr.bf16.mxu0 0
        %1587 = vmatpush1.bf16.msra.mxu0 0
        %1588 = vmatprep.mubr.bf16.mxu0 0
        %1589 = vmatmul.mubr.bf16.gmra.mrb[0].mxu0 %v1554
        %v1590 = vpop.f32.mrb[0].mxu0
        %v1591 = vadd.f32 0.0, %v1590
        %v1592 = vpop.f32.mrb[0].mxu0
        %v1593 = vpop.f32.mrb[0].mxu0
        %v1594 = vadd.f32 0.0, %v1593
        %v1595 = vpop.f32.mrb[0].mxu0
        %1596 = vdwg.mxu0
        %v1597 = vpack.c.bf16 %v1594, %v1591
        %1598 = vmatprep.subr.bf16.mxu0 0
        %1599 = vmatpush1.bf16.msra.mxu0 %v1597
        %1600 = vmatprep.subr.bf16.mxu0 0
        %1601 = vmatpush1.bf16.msra.mxu0 0
        %1602 = vmatprep.subr.bf16.mxu0 0
        %1603 = vmatpush1.bf16.msra.mxu0 0
        %1604 = vmatprep.subr.bf16.mxu0 0
        %1605 = vmatpush1.bf16.msra.mxu0 0
        %1606 = vmatprep.subr.bf16.mxu0 0
        %1607 = vmatpush1.bf16.msra.mxu0 0
        %1608 = vmatprep.subr.bf16.mxu0 0
        %1609 = vmatpush1.bf16.msra.mxu0 0
        %1610 = vmatprep.subr.bf16.mxu0 0
        %1611 = vmatpush1.bf16.msra.mxu0 0
        %1612 = vmatprep.subr.bf16.mxu0 0
        %1613 = vmatpush1.bf16.msra.mxu0 0
        %1614 = vmatprep.subr.bf16.mxu0 0
        %1615 = vmatpush1.bf16.msra.mxu0 0
        %1616 = vmatprep.subr.bf16.mxu0 0
        %1617 = vmatpush1.bf16.msra.mxu0 0
        %1618 = vmatprep.subr.bf16.mxu0 0
        %1619 = vmatpush1.bf16.msra.mxu0 0
        %1620 = vmatprep.subr.bf16.mxu0 0
        %1621 = vmatpush1.bf16.msra.mxu0 0
        %1622 = vmatprep.subr.bf16.mxu0 0
        %1623 = vmatpush1.bf16.msra.mxu0 0
        %1624 = vmatprep.subr.bf16.mxu0 0
        %1625 = vmatpush1.bf16.msra.mxu0 0
        %1626 = vmatprep.subr.bf16.mxu0 0
        %1627 = vmatpush1.bf16.msra.mxu0 0
        %1628 = vmatprep.subr.bf16.mxu0 0
        %1629 = vmatpush1.bf16.msra.mxu0 0
        %1630 = vmatprep.mubr.bf16.mxu0 0
        %1631 = vmatmul.mubr.bf16.gmra.mrb[0].mxu0 %v1181
        %v1632 = vpop.f32.mrb[0].mxu0
        %v1633 = vadd.f32 0.0, %v1632
        %v1634 = vpop.f32.mrb[0].mxu0
        %v1635 = vpop.f32.mrb[0].mxu0
        %v1636 = vadd.f32 0.0, %v1635
        %v1637 = vpop.f32.mrb[0].mxu0
        %1638 = vmatprep.mubr.bf16.mxu0 0
        %1639 = vmatmul.mubr.bf16.gmra.mrb[0].mxu0 %v1184
        %v1640 = vpop.f32.mrb[0].mxu0
        %v1641 = vadd.f32 0.0, %v1640
        %v1642 = vpop.f32.mrb[0].mxu0
        %v1643 = vpop.f32.mrb[0].mxu0
        %v1644 = vadd.f32 0.0, %v1643
        %v1645 = vpop.f32.mrb[0].mxu0
        %1646 = vmatprep.mubr.bf16.mxu0 0
        %1647 = vmatmul.mubr.bf16.gmra.mrb[0].mxu0 %v1187
        %v1648 = vpop.f32.mrb[0].mxu0
        %v1649 = vadd.f32 0.0, %v1648
        %v1650 = vpop.f32.mrb[0].mxu0
        %v1651 = vpop.f32.mrb[0].mxu0
        %v1652 = vpop.f32.mrb[0].mxu0
        %1653 = vdwg.mxu0
        %s1654 = scalar_lea.vmem %s244, 120
        %1655 = vst.msk [vmem:[%s1654] sm:$0xff] %vm1245, %v1633
        %1656 = vst.msk [vmem:[%s1654 + $0x8] sm:$0xff] %vm1245, %v1636
        %1657 = vst.msk [vmem:[%s1654 + $0x10] sm:$0xff] %vm1245, %v1641
        %1658 = vst.msk [vmem:[%s1654 + $0x18] sm:$0xff] %vm1245, %v1644
        %1659 = vst.msk [vmem:[%s1654 + $0x20] sm:$0x1f] %vm1250, %v1649
        %v1660 = vrot.slane %v1064, 4
        %v1661 = vrot.slane %v1065, 3
        %v1662 = vsel %vm1081, %v1661, %v1660
        %v1663 = vrot.slane %v1066, 2
        %v1664 = vsel %vm1084, %v1663, %v1662
        %v1665 = vrot.slane %v1067, 1
        %v1666 = vsel %vm1087, %v1665, %v1664
        %v1667 = vsel %vm1090, %v1068, %v1666
        %v1668 = vrot.slane %v1069, 7
        %v1669 = vsel %vm1093, %v1668, %v1667
        %v1670 = vrot.slane %v1070, 6
        %v1671 = vsel %vm1096, %v1670, %v1669
        %v1672 = vrot.slane %v1071, 5
        %v1673 = vsel %vm1099, %v1672, %v1671
        %v1674 = vrot.slane %v1072, 4
        %v1675 = vrot.slane %v1073, 3
        %v1676 = vsel %vm1081, %v1675, %v1674
        %v1677 = vrot.slane %v1074, 2
        %v1678 = vsel %vm1084, %v1677, %v1676
        %v1679 = vrot.slane %v1075, 1
        %v1680 = vsel %vm1087, %v1679, %v1678
        %v1681 = vsel %vm1090, %v1076, %v1680
        %v1682 = vrot.slane %v1077, 7
        %v1683 = vsel %vm1093, %v1682, %v1681
        %v1684 = vrot.slane %v1078, 6
        %v1685 = vsel %vm1096, %v1684, %v1683
        %v1686 = vrot.slane %v1079, 5
        %v1687 = vsel %vm1099, %v1686, %v1685
        %v1688 = vpack.c.b16 %v1687, %v1673
        %v1690 = vsel %vm298, %v1688, 0
        %1692 = vmatprep.subr.bf16.mxu0 0
        %1693 = vmatpush1.bf16.msra.mxu0 %v1120
        %1694 = vmatprep.subr.bf16.mxu0 0
        %1695 = vmatpush1.bf16.msra.mxu0 0
        %1696 = vmatprep.subr.bf16.mxu0 0
        %1697 = vmatpush1.bf16.msra.mxu0 0
        %1698 = vmatprep.subr.bf16.mxu0 0
        %1699 = vmatpush1.bf16.msra.mxu0 0
        %1700 = vmatprep.subr.bf16.mxu0 0
        %1701 = vmatpush1.bf16.msra.mxu0 0
        %1702 = vmatprep.subr.bf16.mxu0 0
        %1703 = vmatpush1.bf16.msra.mxu0 0
        %1704 = vmatprep.subr.bf16.mxu0 0
        %1705 = vmatpush1.bf16.msra.mxu0 0
        %1706 = vmatprep.subr.bf16.mxu0 0
        %1707 = vmatpush1.bf16.msra.mxu0 0
        %1708 = vmatprep.subr.bf16.mxu0 0
        %1709 = vmatpush1.bf16.msra.mxu0 0
        %1710 = vmatprep.subr.bf16.mxu0 0
        %1711 = vmatpush1.bf16.msra.mxu0 0
        %1712 = vmatprep.subr.bf16.mxu0 0
        %1713 = vmatpush1.bf16.msra.mxu0 0
        %1714 = vmatprep.subr.bf16.mxu0 0
        %1715 = vmatpush1.bf16.msra.mxu0 0
        %1716 = vmatprep.subr.bf16.mxu0 0
        %1717 = vmatpush1.bf16.msra.mxu0 0
        %1718 = vmatprep.subr.bf16.mxu0 0
        %1719 = vmatpush1.bf16.msra.mxu0 0
        %1720 = vmatprep.subr.bf16.mxu0 0
        %1721 = vmatpush1.bf16.msra.mxu0 0
        %1722 = vmatprep.subr.bf16.mxu0 0
        %1723 = vmatpush1.bf16.msra.mxu0 0
        %1724 = vmatprep.mubr.bf16.mxu0 0
        %1725 = vmatmul.mubr.bf16.gmra.mrb[0].mxu0 %v1690
        %v1726 = vpop.f32.mrb[0].mxu0
        %v1727 = vadd.f32 0.0, %v1726
        %v1728 = vpop.f32.mrb[0].mxu0
        %v1729 = vpop.f32.mrb[0].mxu0
        %v1730 = vadd.f32 0.0, %v1729
        %v1731 = vpop.f32.mrb[0].mxu0
        %1732 = vdwg.mxu0
        %v1733 = vpack.c.bf16 %v1730, %v1727
        %1734 = vmatprep.subr.bf16.mxu0 0
        %1735 = vmatpush1.bf16.msra.mxu0 %v1733
        %1736 = vmatprep.subr.bf16.mxu0 0
        %1737 = vmatpush1.bf16.msra.mxu0 0
        %1738 = vmatprep.subr.bf16.mxu0 0
        %1739 = vmatpush1.bf16.msra.mxu0 0
        %1740 = vmatprep.subr.bf16.mxu0 0
        %1741 = vmatpush1.bf16.msra.mxu0 0
        %1742 = vmatprep.subr.bf16.mxu0 0
        %1743 = vmatpush1.bf16.msra.mxu0 0
        %1744 = vmatprep.subr.bf16.mxu0 0
        %1745 = vmatpush1.bf16.msra.mxu0 0
        %1746 = vmatprep.subr.bf16.mxu0 0
        %1747 = vmatpush1.bf16.msra.mxu0 0
        %1748 = vmatprep.subr.bf16.mxu0 0
        %1749 = vmatpush1.bf16.msra.mxu0 0
        %1750 = vmatprep.subr.bf16.mxu0 0
        %1751 = vmatpush1.bf16.msra.mxu0 0
        %1752 = vmatprep.subr.bf16.mxu0 0
        %1753 = vmatpush1.bf16.msra.mxu0 0
        %1754 = vmatprep.subr.bf16.mxu0 0
        %1755 = vmatpush1.bf16.msra.mxu0 0
        %1756 = vmatprep.subr.bf16.mxu0 0
        %1757 = vmatpush1.bf16.msra.mxu0 0
        %1758 = vmatprep.subr.bf16.mxu0 0
        %1759 = vmatpush1.bf16.msra.mxu0 0
        %1760 = vmatprep.subr.bf16.mxu0 0
        %1761 = vmatpush1.bf16.msra.mxu0 0
        %1762 = vmatprep.subr.bf16.mxu0 0
        %1763 = vmatpush1.bf16.msra.mxu0 0
        %1764 = vmatprep.subr.bf16.mxu0 0
        %1765 = vmatpush1.bf16.msra.mxu0 0
        %1766 = vmatprep.mubr.bf16.mxu0 0
        %1767 = vmatmul.mubr.bf16.gmra.mrb[0].mxu0 %v1181
        %v1768 = vpop.f32.mrb[0].mxu0
        %v1769 = vadd.f32 0.0, %v1768
        %v1770 = vpop.f32.mrb[0].mxu0
        %v1771 = vpop.f32.mrb[0].mxu0
        %v1772 = vadd.f32 0.0, %v1771
        %v1773 = vpop.f32.mrb[0].mxu0
        %1774 = vmatprep.mubr.bf16.mxu0 0
        %1775 = vmatmul.mubr.bf16.gmra.mrb[0].mxu0 %v1184
        %v1776 = vpop.f32.mrb[0].mxu0
        %v1777 = vadd.f32 0.0, %v1776
        %v1778 = vpop.f32.mrb[0].mxu0
        %v1779 = vpop.f32.mrb[0].mxu0
        %v1780 = vadd.f32 0.0, %v1779
        %v1781 = vpop.f32.mrb[0].mxu0
        %1782 = vmatprep.mubr.bf16.mxu0 0
        %1783 = vmatmul.mubr.bf16.gmra.mrb[0].mxu0 %v1187
        %v1784 = vpop.f32.mrb[0].mxu0
        %v1785 = vadd.f32 0.0, %v1784
        %v1786 = vpop.f32.mrb[0].mxu0
        %v1787 = vpop.f32.mrb[0].mxu0
        %v1788 = vpop.f32.mrb[0].mxu0
        %1789 = vdwg.mxu0
        %s1790 = scalar_lea.vmem %s244, 160
        %1791 = vst.msk [vmem:[%s1790] sm:$0xff] %vm1245, %v1769
        %1792 = vst.msk [vmem:[%s1790 + $0x8] sm:$0xff] %vm1245, %v1772
        %1793 = vst.msk [vmem:[%s1790 + $0x10] sm:$0xff] %vm1245, %v1777
        %1794 = vst.msk [vmem:[%s1790 + $0x18] sm:$0xff] %vm1245, %v1780
        %1795 = vst.msk [vmem:[%s1790 + $0x20] sm:$0x1f] %vm1250, %v1785
        %v1796 = vrot.slane %v1064, 5
        %v1797 = vrot.slane %v1065, 4
        %v1798 = vsel %vm1081, %v1797, %v1796
        %v1799 = vrot.slane %v1066, 3
        %v1800 = vsel %vm1084, %v1799, %v1798
        %v1801 = vrot.slane %v1067, 2
        %v1802 = vsel %vm1087, %v1801, %v1800
        %v1803 = vrot.slane %v1068, 1
        %v1804 = vsel %vm1090, %v1803, %v1802
        %v1805 = vsel %vm1093, %v1069, %v1804
        %v1806 = vrot.slane %v1070, 7
        %v1807 = vsel %vm1096, %v1806, %v1805
        %v1808 = vrot.slane %v1071, 6
        %v1809 = vsel %vm1099, %v1808, %v1807
        %v1810 = vrot.slane %v1072, 5
        %v1811 = vrot.slane %v1073, 4
        %v1812 = vsel %vm1081, %v1811, %v1810
        %v1813 = vrot.slane %v1074, 3
        %v1814 = vsel %vm1084, %v1813, %v1812
        %v1815 = vrot.slane %v1075, 2
        %v1816 = vsel %vm1087, %v1815, %v1814
        %v1817 = vrot.slane %v1076, 1
        %v1818 = vsel %vm1090, %v1817, %v1816
        %v1819 = vsel %vm1093, %v1077, %v1818
        %v1820 = vrot.slane %v1078, 7
        %v1821 = vsel %vm1096, %v1820, %v1819
        %v1822 = vrot.slane %v1079, 6
        %v1823 = vsel %vm1099, %v1822, %v1821
        %v1824 = vpack.c.b16 %v1823, %v1809
        %v1826 = vsel %vm298, %v1824, 0
        %1828 = vmatprep.subr.bf16.mxu0 0
        %1829 = vmatpush1.bf16.msra.mxu0 %v1120
        %1830 = vmatprep.subr.bf16.mxu0 0
        %1831 = vmatpush1.bf16.msra.mxu0 0
        %1832 = vmatprep.subr.bf16.mxu0 0
        %1833 = vmatpush1.bf16.msra.mxu0 0
        %1834 = vmatprep.subr.bf16.mxu0 0
        %1835 = vmatpush1.bf16.msra.mxu0 0
        %1836 = vmatprep.subr.bf16.mxu0 0
        %1837 = vmatpush1.bf16.msra.mxu0 0
        %1838 = vmatprep.subr.bf16.mxu0 0
        %1839 = vmatpush1.bf16.msra.mxu0 0
        %1840 = vmatprep.subr.bf16.mxu0 0
        %1841 = vmatpush1.bf16.msra.mxu0 0
        %1842 = vmatprep.subr.bf16.mxu0 0
        %1843 = vmatpush1.bf16.msra.mxu0 0
        %1844 = vmatprep.subr.bf16.mxu0 0
        %1845 = vmatpush1.bf16.msra.mxu0 0
        %1846 = vmatprep.subr.bf16.mxu0 0
        %1847 = vmatpush1.bf16.msra.mxu0 0
        %1848 = vmatprep.subr.bf16.mxu0 0
        %1849 = vmatpush1.bf16.msra.mxu0 0
        %1850 = vmatprep.subr.bf16.mxu0 0
        %1851 = vmatpush1.bf16.msra.mxu0 0
        %1852 = vmatprep.subr.bf16.mxu0 0
        %1853 = vmatpush1.bf16.msra.mxu0 0
        %1854 = vmatprep.subr.bf16.mxu0 0
        %1855 = vmatpush1.bf16.msra.mxu0 0
        %1856 = vmatprep.subr.bf16.mxu0 0
        %1857 = vmatpush1.bf16.msra.mxu0 0
        %1858 = vmatprep.subr.bf16.mxu0 0
        %1859 = vmatpush1.bf16.msra.mxu0 0
        %1860 = vmatprep.mubr.bf16.mxu0 0
        %1861 = vmatmul.mubr.bf16.gmra.mrb[0].mxu0 %v1826
        %v1862 = vpop.f32.mrb[0].mxu0
        %v1863 = vadd.f32 0.0, %v1862
        %v1864 = vpop.f32.mrb[0].mxu0
        %v1865 = vpop.f32.mrb[0].mxu0
        %v1866 = vadd.f32 0.0, %v1865
        %v1867 = vpop.f32.mrb[0].mxu0
        %1868 = vdwg.mxu0
        %v1869 = vpack.c.bf16 %v1866, %v1863
        %1870 = vmatprep.subr.bf16.mxu0 0
        %1871 = vmatpush1.bf16.msra.mxu0 %v1869
        %1872 = vmatprep.subr.bf16.mxu0 0
        %1873 = vmatpush1.bf16.msra.mxu0 0
        %1874 = vmatprep.subr.bf16.mxu0 0
        %1875 = vmatpush1.bf16.msra.mxu0 0
        %1876 = vmatprep.subr.bf16.mxu0 0
        %1877 = vmatpush1.bf16.msra.mxu0 0
        %1878 = vmatprep.subr.bf16.mxu0 0
        %1879 = vmatpush1.bf16.msra.mxu0 0
        %1880 = vmatprep.subr.bf16.mxu0 0
        %1881 = vmatpush1.bf16.msra.mxu0 0
        %1882 = vmatprep.subr.bf16.mxu0 0
        %1883 = vmatpush1.bf16.msra.mxu0 0
        %1884 = vmatprep.subr.bf16.mxu0 0
        %1885 = vmatpush1.bf16.msra.mxu0 0
        %1886 = vmatprep.subr.bf16.mxu0 0
        %1887 = vmatpush1.bf16.msra.mxu0 0
        %1888 = vmatprep.subr.bf16.mxu0 0
        %1889 = vmatpush1.bf16.msra.mxu0 0
        %1890 = vmatprep.subr.bf16.mxu0 0
        %1891 = vmatpush1.bf16.msra.mxu0 0
        %1892 = vmatprep.subr.bf16.mxu0 0
        %1893 = vmatpush1.bf16.msra.mxu0 0
        %1894 = vmatprep.subr.bf16.mxu0 0
        %1895 = vmatpush1.bf16.msra.mxu0 0
        %1896 = vmatprep.subr.bf16.mxu0 0
        %1897 = vmatpush1.bf16.msra.mxu0 0
        %1898 = vmatprep.subr.bf16.mxu0 0
        %1899 = vmatpush1.bf16.msra.mxu0 0
        %1900 = vmatprep.subr.bf16.mxu0 0
        %1901 = vmatpush1.bf16.msra.mxu0 0
        %1902 = vmatprep.mubr.bf16.mxu0 0
        %1903 = vmatmul.mubr.bf16.gmra.mrb[0].mxu0 %v1181
        %v1904 = vpop.f32.mrb[0].mxu0
        %v1905 = vadd.f32 0.0, %v1904
        %v1906 = vpop.f32.mrb[0].mxu0
        %v1907 = vpop.f32.mrb[0].mxu0
        %v1908 = vadd.f32 0.0, %v1907
        %v1909 = vpop.f32.mrb[0].mxu0
        %1910 = vmatprep.mubr.bf16.mxu0 0
        %1911 = vmatmul.mubr.bf16.gmra.mrb[0].mxu0 %v1184
        %v1912 = vpop.f32.mrb[0].mxu0
        %v1913 = vadd.f32 0.0, %v1912
        %v1914 = vpop.f32.mrb[0].mxu0
        %v1915 = vpop.f32.mrb[0].mxu0
        %v1916 = vadd.f32 0.0, %v1915
        %v1917 = vpop.f32.mrb[0].mxu0
        %1918 = vmatprep.mubr.bf16.mxu0 0
        %1919 = vmatmul.mubr.bf16.gmra.mrb[0].mxu0 %v1187
        %v1920 = vpop.f32.mrb[0].mxu0
        %v1921 = vadd.f32 0.0, %v1920
        %v1922 = vpop.f32.mrb[0].mxu0
        %v1923 = vpop.f32.mrb[0].mxu0
        %v1924 = vpop.f32.mrb[0].mxu0
        %1925 = vdwg.mxu0
        %s1926 = scalar_lea.vmem %s244, 200
        %1927 = vst.msk [vmem:[%s1926] sm:$0xff] %vm1245, %v1905
        %1928 = vst.msk [vmem:[%s1926 + $0x8] sm:$0xff] %vm1245, %v1908
        %1929 = vst.msk [vmem:[%s1926 + $0x10] sm:$0xff] %vm1245, %v1913
        %1930 = vst.msk [vmem:[%s1926 + $0x18] sm:$0xff] %vm1245, %v1916
        %1931 = vst.msk [vmem:[%s1926 + $0x20] sm:$0x1f] %vm1250, %v1921
        %v1932 = vrot.slane %v1064, 6
        %v1933 = vrot.slane %v1065, 5
        %v1934 = vsel %vm1081, %v1933, %v1932
        %v1935 = vrot.slane %v1066, 4
        %v1936 = vsel %vm1084, %v1935, %v1934
        %v1937 = vrot.slane %v1067, 3
        %v1938 = vsel %vm1087, %v1937, %v1936
        %v1939 = vrot.slane %v1068, 2
        %v1940 = vsel %vm1090, %v1939, %v1938
        %v1941 = vrot.slane %v1069, 1
        %v1942 = vsel %vm1093, %v1941, %v1940
        %v1943 = vsel %vm1096, %v1070, %v1942
        %v1944 = vrot.slane %v1071, 7
        %v1945 = vsel %vm1099, %v1944, %v1943
        %v1946 = vrot.slane %v1072, 6
        %v1947 = vrot.slane %v1073, 5
        %v1948 = vsel %vm1081, %v1947, %v1946
        %v1949 = vrot.slane %v1074, 4
        %v1950 = vsel %vm1084, %v1949, %v1948
        %v1951 = vrot.slane %v1075, 3
        %v1952 = vsel %vm1087, %v1951, %v1950
        %v1953 = vrot.slane %v1076, 2
        %v1954 = vsel %vm1090, %v1953, %v1952
        %v1955 = vrot.slane %v1077, 1
        %v1956 = vsel %vm1093, %v1955, %v1954
        %v1957 = vsel %vm1096, %v1078, %v1956
        %v1958 = vrot.slane %v1079, 7
        %v1959 = vsel %vm1099, %v1958, %v1957
        %v1960 = vpack.c.b16 %v1959, %v1945
        %v1962 = vsel %vm298, %v1960, 0
        %1964 = vmatprep.subr.bf16.mxu0 0
        %1965 = vmatpush1.bf16.msra.mxu0 %v1120
        %1966 = vmatprep.subr.bf16.mxu0 0
        %1967 = vmatpush1.bf16.msra.mxu0 0
        %1968 = vmatprep.subr.bf16.mxu0 0
        %1969 = vmatpush1.bf16.msra.mxu0 0
        %1970 = vmatprep.subr.bf16.mxu0 0
        %1971 = vmatpush1.bf16.msra.mxu0 0
        %1972 = vmatprep.subr.bf16.mxu0 0
        %1973 = vmatpush1.bf16.msra.mxu0 0
        %1974 = vmatprep.subr.bf16.mxu0 0
        %1975 = vmatpush1.bf16.msra.mxu0 0
        %1976 = vmatprep.subr.bf16.mxu0 0
        %1977 = vmatpush1.bf16.msra.mxu0 0
        %1978 = vmatprep.subr.bf16.mxu0 0
        %1979 = vmatpush1.bf16.msra.mxu0 0
        %1980 = vmatprep.subr.bf16.mxu0 0
        %1981 = vmatpush1.bf16.msra.mxu0 0
        %1982 = vmatprep.subr.bf16.mxu0 0
        %1983 = vmatpush1.bf16.msra.mxu0 0
        %1984 = vmatprep.subr.bf16.mxu0 0
        %1985 = vmatpush1.bf16.msra.mxu0 0
        %1986 = vmatprep.subr.bf16.mxu0 0
        %1987 = vmatpush1.bf16.msra.mxu0 0
        %1988 = vmatprep.subr.bf16.mxu0 0
        %1989 = vmatpush1.bf16.msra.mxu0 0
        %1990 = vmatprep.subr.bf16.mxu0 0
        %1991 = vmatpush1.bf16.msra.mxu0 0
        %1992 = vmatprep.subr.bf16.mxu0 0
        %1993 = vmatpush1.bf16.msra.mxu0 0
        %1994 = vmatprep.subr.bf16.mxu0 0
        %1995 = vmatpush1.bf16.msra.mxu0 0
        %1996 = vmatprep.mubr.bf16.mxu0 0
        %1997 = vmatmul.mubr.bf16.gmra.mrb[0].mxu0 %v1962
        %v1998 = vpop.f32.mrb[0].mxu0
        %v1999 = vadd.f32 0.0, %v1998
        %v2000 = vpop.f32.mrb[0].mxu0
        %v2001 = vpop.f32.mrb[0].mxu0
        %v2002 = vadd.f32 0.0, %v2001
        %v2003 = vpop.f32.mrb[0].mxu0
        %2004 = vdwg.mxu0
        %v2005 = vpack.c.bf16 %v2002, %v1999
        %2006 = vmatprep.subr.bf16.mxu0 0
        %2007 = vmatpush1.bf16.msra.mxu0 %v2005
        %2008 = vmatprep.subr.bf16.mxu0 0
        %2009 = vmatpush1.bf16.msra.mxu0 0
        %2010 = vmatprep.subr.bf16.mxu0 0
        %2011 = vmatpush1.bf16.msra.mxu0 0
        %2012 = vmatprep.subr.bf16.mxu0 0
        %2013 = vmatpush1.bf16.msra.mxu0 0
        %2014 = vmatprep.subr.bf16.mxu0 0
        %2015 = vmatpush1.bf16.msra.mxu0 0
        %2016 = vmatprep.subr.bf16.mxu0 0
        %2017 = vmatpush1.bf16.msra.mxu0 0
        %2018 = vmatprep.subr.bf16.mxu0 0
        %2019 = vmatpush1.bf16.msra.mxu0 0
        %2020 = vmatprep.subr.bf16.mxu0 0
        %2021 = vmatpush1.bf16.msra.mxu0 0
        %2022 = vmatprep.subr.bf16.mxu0 0
        %2023 = vmatpush1.bf16.msra.mxu0 0
        %2024 = vmatprep.subr.bf16.mxu0 0
        %2025 = vmatpush1.bf16.msra.mxu0 0
        %2026 = vmatprep.subr.bf16.mxu0 0
        %2027 = vmatpush1.bf16.msra.mxu0 0
        %2028 = vmatprep.subr.bf16.mxu0 0
        %2029 = vmatpush1.bf16.msra.mxu0 0
        %2030 = vmatprep.subr.bf16.mxu0 0
        %2031 = vmatpush1.bf16.msra.mxu0 0
        %2032 = vmatprep.subr.bf16.mxu0 0
        %2033 = vmatpush1.bf16.msra.mxu0 0
        %2034 = vmatprep.subr.bf16.mxu0 0
        %2035 = vmatpush1.bf16.msra.mxu0 0
        %2036 = vmatprep.subr.bf16.mxu0 0
        %2037 = vmatpush1.bf16.msra.mxu0 0
        %2038 = vmatprep.mubr.bf16.mxu0 0
        %2039 = vmatmul.mubr.bf16.gmra.mrb[0].mxu0 %v1181
        %v2040 = vpop.f32.mrb[0].mxu0
        %v2041 = vadd.f32 0.0, %v2040
        %v2042 = vpop.f32.mrb[0].mxu0
        %v2043 = vpop.f32.mrb[0].mxu0
        %v2044 = vadd.f32 0.0, %v2043
        %v2045 = vpop.f32.mrb[0].mxu0
        %2046 = vmatprep.mubr.bf16.mxu0 0
        %2047 = vmatmul.mubr.bf16.gmra.mrb[0].mxu0 %v1184
        %v2048 = vpop.f32.mrb[0].mxu0
        %v2049 = vadd.f32 0.0, %v2048
        %v2050 = vpop.f32.mrb[0].mxu0
        %v2051 = vpop.f32.mrb[0].mxu0
        %v2052 = vadd.f32 0.0, %v2051
        %v2053 = vpop.f32.mrb[0].mxu0
        %2054 = vmatprep.mubr.bf16.mxu0 0
        %2055 = vmatmul.mubr.bf16.gmra.mrb[0].mxu0 %v1187
        %v2056 = vpop.f32.mrb[0].mxu0
        %v2057 = vadd.f32 0.0, %v2056
        %v2058 = vpop.f32.mrb[0].mxu0
        %v2059 = vpop.f32.mrb[0].mxu0
        %v2060 = vpop.f32.mrb[0].mxu0
        %2061 = vdwg.mxu0
        %s2062 = scalar_lea.vmem %s244, 240
        %2063 = vst.msk [vmem:[%s2062] sm:$0xff] %vm1245, %v2041
        %2064 = vst.msk [vmem:[%s2062 + $0x8] sm:$0xff] %vm1245, %v2044
        %2065 = vst.msk [vmem:[%s2062 + $0x10] sm:$0xff] %vm1245, %v2049
        %2066 = vst.msk [vmem:[%s2062 + $0x18] sm:$0xff] %vm1245, %v2052
        %2067 = vst.msk [vmem:[%s2062 + $0x20] sm:$0x1f] %vm1250, %v2057
        %v2068 = vrot.slane %v1064, 7
        %v2069 = vrot.slane %v1065, 6
        %v2070 = vsel %vm1081, %v2069, %v2068
        %v2071 = vrot.slane %v1066, 5
        %v2072 = vsel %vm1084, %v2071, %v2070
        %v2073 = vrot.slane %v1067, 4
        %v2074 = vsel %vm1087, %v2073, %v2072
        %v2075 = vrot.slane %v1068, 3
        %v2076 = vsel %vm1090, %v2075, %v2074
        %v2077 = vrot.slane %v1069, 2
        %v2078 = vsel %vm1093, %v2077, %v2076
        %v2079 = vrot.slane %v1070, 1
        %v2080 = vsel %vm1096, %v2079, %v2078
        %v2081 = vsel %vm1099, %v1071, %v2080
        %v2082 = vrot.slane %v1072, 7
        %v2083 = vrot.slane %v1073, 6
        %v2084 = vsel %vm1081, %v2083, %v2082
        %v2085 = vrot.slane %v1074, 5
        %v2086 = vsel %vm1084, %v2085, %v2084
        %v2087 = vrot.slane %v1075, 4
        %v2088 = vsel %vm1087, %v2087, %v2086
        %v2089 = vrot.slane %v1076, 3
        %v2090 = vsel %vm1090, %v2089, %v2088
        %v2091 = vrot.slane %v1077, 2
        %v2092 = vsel %vm1093, %v2091, %v2090
        %v2093 = vrot.slane %v1078, 1
        %v2094 = vsel %vm1096, %v2093, %v2092
        %v2095 = vsel %vm1099, %v1079, %v2094
        %v2096 = vpack.c.b16 %v2095, %v2081
        %v2098 = vsel %vm298, %v2096, 0
        %2100 = vmatprep.subr.bf16.mxu0 0
        %2101 = vmatpush1.bf16.msra.mxu0 %v1120
        %2102 = vmatprep.subr.bf16.mxu0 0
        %2103 = vmatpush1.bf16.msra.mxu0 0
        %2104 = vmatprep.subr.bf16.mxu0 0
        %2105 = vmatpush1.bf16.msra.mxu0 0
        %2106 = vmatprep.subr.bf16.mxu0 0
        %2107 = vmatpush1.bf16.msra.mxu0 0
        %2108 = vmatprep.subr.bf16.mxu0 0
        %2109 = vmatpush1.bf16.msra.mxu0 0
        %2110 = vmatprep.subr.bf16.mxu0 0
        %2111 = vmatpush1.bf16.msra.mxu0 0
        %2112 = vmatprep.subr.bf16.mxu0 0
        %2113 = vmatpush1.bf16.msra.mxu0 0
        %2114 = vmatprep.subr.bf16.mxu0 0
        %2115 = vmatpush1.bf16.msra.mxu0 0
        %2116 = vmatprep.subr.bf16.mxu0 0
        %2117 = vmatpush1.bf16.msra.mxu0 0
        %2118 = vmatprep.subr.bf16.mxu0 0
        %2119 = vmatpush1.bf16.msra.mxu0 0
        %2120 = vmatprep.subr.bf16.mxu0 0
        %2121 = vmatpush1.bf16.msra.mxu0 0
        %2122 = vmatprep.subr.bf16.mxu0 0
        %2123 = vmatpush1.bf16.msra.mxu0 0
        %2124 = vmatprep.subr.bf16.mxu0 0
        %2125 = vmatpush1.bf16.msra.mxu0 0
        %2126 = vmatprep.subr.bf16.mxu0 0
        %2127 = vmatpush1.bf16.msra.mxu0 0
        %2128 = vmatprep.subr.bf16.mxu0 0
        %2129 = vmatpush1.bf16.msra.mxu0 0
        %2130 = vmatprep.subr.bf16.mxu0 0
        %2131 = vmatpush1.bf16.msra.mxu0 0
        %2132 = vmatprep.mubr.bf16.mxu0 0
        %2133 = vmatmul.mubr.bf16.gmra.mrb[0].mxu0 %v2098
        %v2134 = vpop.f32.mrb[0].mxu0
        %v2135 = vadd.f32 0.0, %v2134
        %v2136 = vpop.f32.mrb[0].mxu0
        %v2137 = vpop.f32.mrb[0].mxu0
        %v2138 = vadd.f32 0.0, %v2137
        %v2139 = vpop.f32.mrb[0].mxu0
        %2140 = vdwg.mxu0
        %v2141 = vpack.c.bf16 %v2138, %v2135
        %2142 = vmatprep.subr.bf16.mxu0 0
        %2143 = vmatpush1.bf16.msra.mxu0 %v2141
        %2144 = vmatprep.subr.bf16.mxu0 0
        %2145 = vmatpush1.bf16.msra.mxu0 0
        %2146 = vmatprep.subr.bf16.mxu0 0
        %2147 = vmatpush1.bf16.msra.mxu0 0
        %2148 = vmatprep.subr.bf16.mxu0 0
        %2149 = vmatpush1.bf16.msra.mxu0 0
        %2150 = vmatprep.subr.bf16.mxu0 0
        %2151 = vmatpush1.bf16.msra.mxu0 0
        %2152 = vmatprep.subr.bf16.mxu0 0
        %2153 = vmatpush1.bf16.msra.mxu0 0
        %2154 = vmatprep.subr.bf16.mxu0 0
        %2155 = vmatpush1.bf16.msra.mxu0 0
        %2156 = vmatprep.subr.bf16.mxu0 0
        %2157 = vmatpush1.bf16.msra.mxu0 0
        %2158 = vmatprep.subr.bf16.mxu0 0
        %2159 = vmatpush1.bf16.msra.mxu0 0
        %2160 = vmatprep.subr.bf16.mxu0 0
        %2161 = vmatpush1.bf16.msra.mxu0 0
        %2162 = vmatprep.subr.bf16.mxu0 0
        %2163 = vmatpush1.bf16.msra.mxu0 0
        %2164 = vmatprep.subr.bf16.mxu0 0
        %2165 = vmatpush1.bf16.msra.mxu0 0
        %2166 = vmatprep.subr.bf16.mxu0 0
        %2167 = vmatpush1.bf16.msra.mxu0 0
        %2168 = vmatprep.subr.bf16.mxu0 0
        %2169 = vmatpush1.bf16.msra.mxu0 0
        %2170 = vmatprep.subr.bf16.mxu0 0
        %2171 = vmatpush1.bf16.msra.mxu0 0
        %2172 = vmatprep.subr.bf16.mxu0 0
        %2173 = vmatpush1.bf16.msra.mxu0 0
        %2174 = vmatprep.mubr.bf16.mxu0 0
        %2175 = vmatmul.mubr.bf16.gmra.mrb[0].mxu0 %v1181
        %v2176 = vpop.f32.mrb[0].mxu0
        %v2177 = vadd.f32 0.0, %v2176
        %v2178 = vpop.f32.mrb[0].mxu0
        %v2179 = vpop.f32.mrb[0].mxu0
        %v2180 = vadd.f32 0.0, %v2179
        %v2181 = vpop.f32.mrb[0].mxu0
        %2182 = vmatprep.mubr.bf16.mxu0 0
        %2183 = vmatmul.mubr.bf16.gmra.mrb[0].mxu0 %v1184
        %v2184 = vpop.f32.mrb[0].mxu0
        %v2185 = vadd.f32 0.0, %v2184
        %v2186 = vpop.f32.mrb[0].mxu0
        %v2187 = vpop.f32.mrb[0].mxu0
        %v2188 = vadd.f32 0.0, %v2187
        %v2189 = vpop.f32.mrb[0].mxu0
        %2190 = vmatprep.mubr.bf16.mxu0 0
        %2191 = vmatmul.mubr.bf16.gmra.mrb[0].mxu0 %v1187
        %v2192 = vpop.f32.mrb[0].mxu0
        %v2193 = vadd.f32 0.0, %v2192
        %v2194 = vpop.f32.mrb[0].mxu0
        %v2195 = vpop.f32.mrb[0].mxu0
        %v2196 = vpop.f32.mrb[0].mxu0
        %2197 = vdwg.mxu0
        %s2198 = scalar_lea.vmem %s244, 280
        %2199 = vst.msk [vmem:[%s2198] sm:$0xff] %vm1245, %v2177
        %2200 = vst.msk [vmem:[%s2198 + $0x8] sm:$0xff] %vm1245, %v2180
        %2201 = vst.msk [vmem:[%s2198 + $0x10] sm:$0xff] %vm1245, %v2185
        %2202 = vst.msk [vmem:[%s2198 + $0x18] sm:$0xff] %vm1245, %v2188
        %2203 = vst.msk [vmem:[%s2198 + $0x20] sm:$0x1f] %vm1250, %v2193
        %p2204 = scmp.lt.s32.totalorder %s19, 1
        %s2205 = scalar_select %p2204, %s19, 1
        %s2206 = smul.addr %s2205, 40
        %s2207 = smul.addr %s2206, 8
        %s2208 = scalar_lea.vmem %s5, %s2207
        // Predicated region
        $region45: #{tpu_custom_call.1} parent=39 // pred_check
          %p2209 = pneg %p147
        $region46: #{tpu_custom_call.1} parent=39 // pred_check_branch
          %2211 = sbr.rel (%p2209) target = $region48
        $region47: #{tpu_custom_call.1} parent=39 // pred_region
          _
        $region48: #{tpu_custom_call.1} parent=39 // pred_fallthru
          _
      $region40: #{tpu_custom_call.1} parent=5 // pred_fallthru
        _
      %p2212 = scmp.le.s32.totalorder 2, %s14
      // Predicated region
      $region49: #{tpu_custom_call.1} parent=5 // pred_check
        %p2213 = pneg %p2212
      $region50: #{tpu_custom_call.1} parent=5 // pred_check_branch
        %2215 = sbr.rel (%p2213) target = $region52
      $region51: #{tpu_custom_call.1} parent=5 // pred_region
        %s2216 = ssub.s32 %s14, 2
        // Predicated region
        $region53: #{tpu_custom_call.1} parent=51 // pred_check
          %p2217 = pneg %p153
        $region54: #{tpu_custom_call.1} parent=51 // pred_check_branch
          %2219 = sbr.rel (%p2217) target = $region56
        $region55: #{tpu_custom_call.1} parent=51 // pred_region
          %p2220 = scmp.lt.s32.totalorder %s20, 1
          %s2221 = scalar_select %p2220, %s20, 1
          %s2222 = smul.addr %s2221, 40
          %s2223 = smul.addr %s2222, 8
          %s2224 = scalar_lea.vmem %s5, %s2223
        $region56: #{tpu_custom_call.1} parent=51 // pred_fallthru
          _
      $region52: #{tpu_custom_call.1} parent=5 // pred_fallthru
        _
    $region6: #{tpu_custom_call.1} parent=1 // loop_footer
      %s18 = sadd.s32 1, %s14
    $region7: #{tpu_custom_call.1} parent=1 // loop_footer_branch
      %13 = sbr.rel target = $region3
    $region8: #{tpu_custom_call.1} parent=1 // loop_exit
      _
    %2225 = vsyncpa [#allocation3], 1
    %s2226 = scalar_lea.sflag [#allocation3], 1
    %2227 = vsyncpa %s2226, 1

</llo_original>
